<compile_context>
chip_gen: v7x
topology: tpu7x:2x2x1
jax: 0.10.0
libtpu: 0.0.40
codegen_flags: <defaults>
</compile_context>

<pallas_src>
import functools
import math

import jax
import jax.numpy as jnp
from jax import lax
from jax.experimental import pallas as pl
from jax.experimental.pallas import tpu as pltpu


def _cross_attention_kernel(x_ref, k_ref, v_ref, wq_ref, bq_ref, wo_ref, bo_ref,
                            o_ref, *, head_num, head_dim, seq_kv):
    f32 = jnp.float32
    x = x_ref[0]                                       # (tq, Hq), compute dtype
    mx_dtype = x.dtype

    # ---- Q projection for all heads at once (full-width MXU matmul); the
    #      1/sqrt(d) softmax scale is folded into q (tq*Hq elems, not tq*Skv).
    scale = 1.0 / math.sqrt(head_dim)
    q = (jnp.dot(x, wq_ref[...], preferred_element_type=f32)
         + bq_ref[...].astype(f32)) * scale            # (tq, Hq) f32
    q = q.astype(mx_dtype)

    k = k_ref[0]                                       # (Skv_pad, Hq)
    v = v_ref[0]                                       # (Skv_pad, Hq)
    skv_pad = k.shape[0]

    # ---- per-head attention.  Scores / PV matmuls are inherently per-head;
    #      the d-wide pieces are static lane slices of full-width tensors.
    ctx_parts = []
    for h in range(head_num):
        lo = h * head_dim
        qh = q[:, lo:lo + head_dim]                    # (tq, d)
        kh = k[:, lo:lo + head_dim]                    # (Skv_pad, d)
        vh = v[:, lo:lo + head_dim]                    # (Skv_pad, d)

        # scores: contract last dims directly (no k^T materialization).
        s = lax.dot_general(qh, kh, (((1,), (1,)), ((), ())),
                            preferred_element_type=f32)    # (tq, Skv_pad) f32
        if skv_pad != seq_kv:
            col = lax.broadcasted_iota(jnp.int32, s.shape, 1)
            s = jnp.where(col < seq_kv, s, -1e30)      # mask padded columns

        # numerically-stable softmax; exact reciprocal (review: no approx).
        m = jnp.max(s, axis=-1, keepdims=True)
        e = jnp.exp(s - m)
        p = e * pl.reciprocal(jnp.sum(e, axis=-1, keepdims=True))
        ctx_parts.append(jnp.dot(p.astype(mx_dtype), vh,
                                 preferred_element_type=f32))   # (tq, d) f32

    ctx = jnp.concatenate(ctx_parts, axis=-1).astype(mx_dtype)  # (tq, Hq)

    # ---- output projection: one full-width matmul (== concat(heads) @ Wo).
    out = (jnp.dot(ctx, wo_ref[...], preferred_element_type=f32)
           + bo_ref[...].astype(f32))
    o_ref[0] = out.astype(o_ref.dtype)                 # lane-dense (tq, Hq) store


def _pick_q_tile(seq_q, skv_pad):
    """Largest query tile (multiple of 8 sublanes) that evenly divides seq_q.

    Capped when the padded context is long so the (tq, Skv_pad) f32 softmax
    temporaries stay bounded (v7x has only 64 MiB VMEM per core); tq=256
    already saturates the MXU M dimension.
    """
    cap = 512 if skv_pad <= 1024 else 256
    for cand in (512, 256, 128, 64, 32, 16, 8):
        if cand <= cap and seq_q % cand == 0:
            return cand
    # TODO(synk): ragged seq_q (not a multiple of 8) needs a masked tail tile.
    return seq_q


def _vmem_limit_bytes(need_bytes):
    """Generation-aware VMEM limit: actual need, clamped to physical - headroom."""
    phys = 64 * 1024 * 1024      # conservative default (v7x per-core VMEM)
    try:
        phys = int(getattr(pltpu.get_tpu_info(), "vmem_capacity_bytes", phys)) or phys
    except Exception:
        pass
    headroom = 12 * 1024 * 1024
    return int(max(32 * 1024 * 1024, min(need_bytes, phys - headroom)))


def cross_attention(x, y, wq, bq, wk, bk, wv, bv, wo, bo, *, head_num,
                    compute_dtype=jnp.bfloat16):
    """Multi-head cross-attention: softmax((xWq)(yWk)^T / sqrt(d)) (yWv) Wo + bo.

    Weights are (in_features, out_features) (PyTorch nn.Linear weight
    transposed); biases are (1, out_features).  MXU operands are cast to
    `compute_dtype` (default bf16, the MXU-native dtype on v5e/v6e/v7x); all
    matmuls accumulate in f32.  Output dtype follows x.dtype.
    """
    B, seq_q, hid_q = x.shape
    By, seq_kv, hid_kv = y.shape
    assert B == By
    assert hid_q % head_num == 0
    d = hid_q // head_num

    cd = compute_dtype
    f32 = jnp.float32
    x_c = x.astype(cd)
    wq_c, wo_c = wq.astype(cd), wo.astype(cd)
    bq_c, bo_c = bq.astype(cd), bo.astype(cd)

    # ---- K / V projections hoisted out of the kernel (plain XLA batched
    #      matmuls with f32 accumulation).  Removes Wk/Wv and per-batch K/V
    #      scratch from the kernel's VMEM budget and lets the query-tile grid
    #      axis be megacore-parallel on v7x.
    k = (jnp.einsum("bsh,ho->bso", y.astype(cd), wk.astype(cd),
                    preferred_element_type=f32) + bk.astype(f32)).astype(cd)
    v = (jnp.einsum("bsh,ho->bso", y.astype(cd), wv.astype(cd),
                    preferred_element_type=f32) + bv.astype(f32)).astype(cd)

    # ---- pad the context length to a multiple of 128 lanes; padded score
    #      columns are masked to -inf in-kernel, padded V rows are zero.
    skv_pad = int(pl.cdiv(seq_kv, 128) * 128)
    if skv_pad != seq_kv:
        pad = ((0, 0), (0, skv_pad - seq_kv), (0, 0))
        k = jnp.pad(k, pad)
        v = jnp.pad(v, pad)

    tq = _pick_q_tile(seq_q, skv_pad)
    n_qt = seq_q // tq

    # ---- VMEM budget: double-buffered blocks + f32 softmax temporaries.
    isz = jnp.dtype(cd).itemsize
    osz = jnp.dtype(x.dtype).itemsize
    need = (2 * tq * hid_q * (isz + osz)               # x / out tiles
            + 2 * 2 * skv_pad * hid_q * isz            # K, V context blocks
            + 2 * 2 * hid_q * hid_q * isz              # Wq, Wo (constant index)
            + 4 * tq * skv_pad * 4                     # s / e / p f32 temporaries
            + 2 * tq * hid_q * 4)                      # q / ctx f32 temporaries
    vmem_limit = _vmem_limit_bytes(int(need * 1.5) + (4 << 20))

    kernel = functools.partial(_cross_attention_kernel,
                               head_num=head_num, head_dim=d, seq_kv=seq_kv)
    const2 = lambda b, qt: (0, 0)    # weights/biases: fetched once, VMEM-resident
    # NOTE: the constant-index weight specs could additionally use
    # pipeline_mode=pl.Buffered(1) to drop their second buffer; with bf16
    # weights and only Wq/Wo resident this is already well within budget.

    return pl.pallas_call(
        kernel,
        out_shape=jax.ShapeDtypeStruct((B, seq_q, hid_q), x.dtype),
        grid=(B, n_qt),
        in_specs=[
            pl.BlockSpec((1, tq, hid_q), lambda b, qt: (b, qt, 0)),       # x tile
            pl.BlockSpec((1, skv_pad, hid_q), lambda b, qt: (b, 0, 0)),   # K (full ctx)
            pl.BlockSpec((1, skv_pad, hid_q), lambda b, qt: (b, 0, 0)),   # V (full ctx)
            pl.BlockSpec((hid_q, hid_q), const2),                         # Wq
            pl.BlockSpec((1, hid_q), const2),                             # bq
            pl.BlockSpec((hid_q, hid_q), const2),                         # Wo
            pl.BlockSpec((1, hid_q), const2),                             # bo
        ],
        out_specs=pl.BlockSpec((1, tq, hid_q), lambda b, qt: (b, qt, 0)),
        compiler_params=pltpu.CompilerParams(
            # No cross-iteration state in the kernel -> both axes are
            # independent and megacore-shardable (v7x: 2 TensorCores).
            dimension_semantics=("parallel", "parallel"),
            vmem_limit_bytes=vmem_limit,
        ),
    )(x_c, k, v, wq_c, bq_c, wo_c, bo_c)


def cross_attention_ref(x, y, wq, bq, wk, bk, wv, bv, wo, bo, *, head_num):
    """Pure-JAX reference mirroring the PyTorch forward exactly."""
    B, Sq, Hq = x.shape
    _, Skv, _ = y.shape
    d = Hq // head_num
    q = x @ wq + bq
    k = y @ wk + bk
    v = y @ wv + bv

    def heads(t, S):
        return jnp.transpose(t.reshape(B, S, head_num, d), (0, 2, 1, 3))

    qh, kh, vh = heads(q, Sq), heads(k, Skv), heads(v, Skv)
    att = (qh @ jnp.swapaxes(kh, -1, -2)) / math.sqrt(d)
    w = jax.nn.softmax(att, axis=-1)
    mid = jnp.transpose(w @ vh, (0, 2, 1, 3)).reshape(B, Sq, Hq)
    return mid @ wo + bo


if __name__ == "__main__":
    # Small shapes consistent with the module: batch=2, seq_q=8, seq_kv=16,
    # hiddendim_q=32, hiddendim_ky=48, head_num=4 (head_dim=8).
    B, SQ, SKV, HQ, HKV, HEADS = 2, 8, 16, 32, 48, 4

    key = jax.random.PRNGKey(0)
    kx, ky, k1, k2, k3, k4, k5, k6, k7, k8 = jax.random.split(key, 10)

    x = jax.random.normal(kx, (B, SQ, HQ), dtype=jnp.float32)
    y = jax.random.normal(ky, (B, SKV, HKV), dtype=jnp.float32)

    # nn.Linear(in, out).weight is (out, in); we pass W^T = (in, out).
    wq = jax.random.normal(k1, (HQ, HQ), jnp.float32) / math.sqrt(HQ)
    wk = jax.random.normal(k2, (HKV, HQ), jnp.float32) / math.sqrt(HKV)
    wv = jax.random.normal(k3, (HKV, HQ), jnp.float32) / math.sqrt(HKV)
    wo = jax.random.normal(k4, (HQ, HQ), jnp.float32) / math.sqrt(HQ)
    bq = jax.random.normal(k5, (1, HQ), jnp.float32) * 0.02
    bk = jax.random.normal(k6, (1, HQ), jnp.float32) * 0.02
    bv = jax.random.normal(k7, (1, HQ), jnp.float32) * 0.02
    bo = jax.random.normal(k8, (1, HQ), jnp.float32) * 0.02

    # Feed the kernel bf16 operands (MXU-native, per the perf review); share
    # that input quantization with the f32 reference so the comparison
    # isolates the kernel's own rounding (f32 accumulation throughout).
    bf = jnp.bfloat16
    args_bf16 = [a.astype(bf) for a in (x, y, wq, bq, wk, bk, wv, bv, wo, bo)]

    out = cross_attention(*args_bf16, head_num=HEADS)
    out = jax.block_until_ready(out)
    assert out.shape == (B, SQ, HQ)
    assert out.dtype == bf

    args_f32 = [a.astype(jnp.float32) for a in args_bf16]
    ref = cross_attention_ref(*args_f32, head_num=HEADS)

    # tolerance sized for bf16 MXU operands and a bf16 output (f32 accumulate).
    diff = float(jnp.max(jnp.abs(out.astype(jnp.float32) - ref)))
    assert jnp.allclose(out.astype(jnp.float32), ref, atol=5e-2, rtol=5e-2), (
        f"mismatch vs pure-JAX reference, max |diff| = {diff}")

    print("KERNEL_OK")
</pallas_src>

<mosaic_0001>
module attributes {stable_mosaic.version = 11 : i64} {
  func.func @_cross_attention_kernel(%arg0: i32, %arg1: i32, %arg2: memref<1x8x32xbf16, #tpu.memory_space<vmem>>, %arg3: memref<1x128x32xbf16, #tpu.memory_space<vmem>>, %arg4: memref<1x128x32xbf16, #tpu.memory_space<vmem>>, %arg5: memref<32x32xbf16, #tpu.memory_space<vmem>>, %arg6: memref<1x32xbf16, #tpu.memory_space<vmem>>, %arg7: memref<32x32xbf16, #tpu.memory_space<vmem>>, %arg8: memref<1x32xbf16, #tpu.memory_space<vmem>>, %arg9: memref<1x8x32xbf16, #tpu.memory_space<vmem>>) attributes {dimension_semantics = [#tpu.dimension_semantics<parallel>, #tpu.dimension_semantics<parallel>], iteration_bounds = array<i64: 2, 1>, scalar_prefetch = 0 : i64, scratch_operands = 0 : i64, tpu.core_type = #tpu.core_type<tc>, window_params = [{transform_indices = @transform_0, window_bounds = array<i64: 1, 8, 32>}, {transform_indices = @transform_1, window_bounds = array<i64: 1, 128, 32>}, {transform_indices = @transform_2, window_bounds = array<i64: 1, 128, 32>}, {pipeline_mode = #tpu.pipeline_mode<synchronous>, transform_indices = @transform_3, window_bounds = array<i64: 32, 32>}, {pipeline_mode = #tpu.pipeline_mode<synchronous>, transform_indices = @transform_4, window_bounds = array<i64: 1, 32>}, {pipeline_mode = #tpu.pipeline_mode<synchronous>, transform_indices = @transform_5, window_bounds = array<i64: 32, 32>}, {pipeline_mode = #tpu.pipeline_mode<synchronous>, transform_indices = @transform_6, window_bounds = array<i64: 1, 32>}, {transform_indices = @transform_7, window_bounds = array<i64: 1, 8, 32>}]} {
    %c0 = arith.constant 0 : index
    %c0_0 = arith.constant 0 : index
    %c0_1 = arith.constant 0 : index
    %0 = vector.load %arg2[%c0, %c0_0, %c0_1] : memref<1x8x32xbf16, #tpu.memory_space<vmem>>, vector<1x8x32xbf16>
    %1 = vector.shape_cast %0 : vector<1x8x32xbf16> to vector<8x32xbf16>
    %c0_2 = arith.constant 0 : index
    %c0_3 = arith.constant 0 : index
    %2 = vector.load %arg5[%c0_2, %c0_3] : memref<32x32xbf16, #tpu.memory_space<vmem>>, vector<32x32xbf16>
    %cst = arith.constant dense<0.000000e+00> : vector<8x32xf32>
    %3 = tpu.matmul %1, %2, %cst {dimension_numbers = #tpu.dot_dimension_numbers<[1], [0], [0], [1], [0, 0, 1, 1], [], []>} : vector<8x32xbf16>, vector<32x32xbf16>, vector<8x32xf32> -> vector<8x32xf32>
    %c0_4 = arith.constant 0 : index
    %c0_5 = arith.constant 0 : index
    %4 = vector.load %arg6[%c0_4, %c0_5] : memref<1x32xbf16, #tpu.memory_space<vmem>>, vector<1x32xbf16>
    %5 = arith.extf %4 : vector<1x32xbf16> to vector<1x32xf32>
    %6 = vector.broadcast %5 : vector<1x32xf32> to vector<8x32xf32>
    %7 = arith.addf %3, %6 : vector<8x32xf32>
    %cst_6 = arith.constant 0.353553385 : f32
    %8 = vector.broadcast %cst_6 : f32 to vector<8x32xf32>
    %9 = arith.mulf %7, %8 : vector<8x32xf32>
    %10 = arith.truncf %9 : vector<8x32xf32> to vector<8x32xbf16>
    %c0_7 = arith.constant 0 : index
    %c0_8 = arith.constant 0 : index
    %c0_9 = arith.constant 0 : index
    %11 = vector.load %arg3[%c0_7, %c0_8, %c0_9] : memref<1x128x32xbf16, #tpu.memory_space<vmem>>, vector<1x128x32xbf16>
    %12 = vector.shape_cast %11 : vector<1x128x32xbf16> to vector<128x32xbf16>
    %c0_10 = arith.constant 0 : index
    %c0_11 = arith.constant 0 : index
    %c0_12 = arith.constant 0 : index
    %13 = vector.load %arg4[%c0_10, %c0_11, %c0_12] : memref<1x128x32xbf16, #tpu.memory_space<vmem>>, vector<1x128x32xbf16>
    %14 = vector.shape_cast %13 : vector<1x128x32xbf16> to vector<128x32xbf16>
    %15 = vector.extract_strided_slice %10 {offsets = [0, 0], sizes = [8, 8], strides = [1, 1]} : vector<8x32xbf16> to vector<8x8xbf16>
    %16 = vector.extract_strided_slice %12 {offsets = [0, 0], sizes = [128, 8], strides = [1, 1]} : vector<128x32xbf16> to vector<128x8xbf16>
    %17 = vector.extract_strided_slice %14 {offsets = [0, 0], sizes = [128, 8], strides = [1, 1]} : vector<128x32xbf16> to vector<128x8xbf16>
    %cst_13 = arith.constant dense<0.000000e+00> : vector<8x128xf32>
    %18 = tpu.matmul %15, %16, %cst_13 {dimension_numbers = #tpu.dot_dimension_numbers<[1], [1], [0], [0], [0, 0, 1, 0], [], []>} : vector<8x8xbf16>, vector<128x8xbf16>, vector<8x128xf32> -> vector<8x128xf32>
    %19 = tpu.iota {dimensions = array<i32: 1>} : vector<8x128xi32>
    %c16_i32 = arith.constant 16 : i32
    %20 = vector.broadcast %c16_i32 : i32 to vector<8x128xi32>
    %21 = arith.cmpi slt, %19, %20 : vector<8x128xi32>
    %cst_14 = arith.constant -1.000000e+30 : f32
    %22 = vector.broadcast %cst_14 : f32 to vector<8x128xf32>
    %23 = arith.select %21, %18, %22 : vector<8x128xi1>, vector<8x128xf32>
    %cst_15 = arith.constant dense<0xFF800000> : vector<8xf32>
    %24 = vector.multi_reduction <maximumf>, %23, %cst_15 [1] : vector<8x128xf32> to vector<8xf32>
    %25 = vector.shape_cast %24 : vector<8xf32> to vector<8x1xf32>
    %26 = vector.broadcast %25 : vector<8x1xf32> to vector<8x128xf32>
    %27 = arith.subf %23, %26 : vector<8x128xf32>
    %28 = math.exp %27 : vector<8x128xf32>
    %cst_16 = arith.constant dense<0.000000e+00> : vector<8xf32>
    %29 = vector.multi_reduction <add>, %28, %cst_16 [1] : vector<8x128xf32> to vector<8xf32>
    %30 = vector.shape_cast %29 : vector<8xf32> to vector<8x1xf32>
    %31 = tpu.reciprocal %30 : vector<8x1xf32> -> vector<8x1xf32>
    %32 = vector.broadcast %31 : vector<8x1xf32> to vector<8x128xf32>
    %33 = arith.mulf %28, %32 : vector<8x128xf32>
    %34 = arith.truncf %33 : vector<8x128xf32> to vector<8x128xbf16>
    %cst_17 = arith.constant dense<0.000000e+00> : vector<8x8xf32>
    %35 = tpu.matmul %34, %17, %cst_17 {dimension_numbers = #tpu.dot_dimension_numbers<[1], [0], [0], [1], [0, 0, 1, 1], [], []>} : vector<8x128xbf16>, vector<128x8xbf16>, vector<8x8xf32> -> vector<8x8xf32>
    %36 = vector.extract_strided_slice %10 {offsets = [0, 8], sizes = [8, 8], strides = [1, 1]} : vector<8x32xbf16> to vector<8x8xbf16>
    %37 = vector.extract_strided_slice %12 {offsets = [0, 8], sizes = [128, 8], strides = [1, 1]} : vector<128x32xbf16> to vector<128x8xbf16>
    %38 = vector.extract_strided_slice %14 {offsets = [0, 8], sizes = [128, 8], strides = [1, 1]} : vector<128x32xbf16> to vector<128x8xbf16>
    %cst_18 = arith.constant dense<0.000000e+00> : vector<8x128xf32>
    %39 = tpu.matmul %36, %37, %cst_18 {dimension_numbers = #tpu.dot_dimension_numbers<[1], [1], [0], [0], [0, 0, 1, 0], [], []>} : vector<8x8xbf16>, vector<128x8xbf16>, vector<8x128xf32> -> vector<8x128xf32>
    %40 = tpu.iota {dimensions = array<i32: 1>} : vector<8x128xi32>
    %c16_i32_19 = arith.constant 16 : i32
    %41 = vector.broadcast %c16_i32_19 : i32 to vector<8x128xi32>
    %42 = arith.cmpi slt, %40, %41 : vector<8x128xi32>
    %cst_20 = arith.constant -1.000000e+30 : f32
    %43 = vector.broadcast %cst_20 : f32 to vector<8x128xf32>
    %44 = arith.select %42, %39, %43 : vector<8x128xi1>, vector<8x128xf32>
    %cst_21 = arith.constant dense<0xFF800000> : vector<8xf32>
    %45 = vector.multi_reduction <maximumf>, %44, %cst_21 [1] : vector<8x128xf32> to vector<8xf32>
    %46 = vector.shape_cast %45 : vector<8xf32> to vector<8x1xf32>
    %47 = vector.broadcast %46 : vector<8x1xf32> to vector<8x128xf32>
    %48 = arith.subf %44, %47 : vector<8x128xf32>
    %49 = math.exp %48 : vector<8x128xf32>
    %cst_22 = arith.constant dense<0.000000e+00> : vector<8xf32>
    %50 = vector.multi_reduction <add>, %49, %cst_22 [1] : vector<8x128xf32> to vector<8xf32>
    %51 = vector.shape_cast %50 : vector<8xf32> to vector<8x1xf32>
    %52 = tpu.reciprocal %51 : vector<8x1xf32> -> vector<8x1xf32>
    %53 = vector.broadcast %52 : vector<8x1xf32> to vector<8x128xf32>
    %54 = arith.mulf %49, %53 : vector<8x128xf32>
    %55 = arith.truncf %54 : vector<8x128xf32> to vector<8x128xbf16>
    %cst_23 = arith.constant dense<0.000000e+00> : vector<8x8xf32>
    %56 = tpu.matmul %55, %38, %cst_23 {dimension_numbers = #tpu.dot_dimension_numbers<[1], [0], [0], [1], [0, 0, 1, 1], [], []>} : vector<8x128xbf16>, vector<128x8xbf16>, vector<8x8xf32> -> vector<8x8xf32>
    %57 = vector.extract_strided_slice %10 {offsets = [0, 16], sizes = [8, 8], strides = [1, 1]} : vector<8x32xbf16> to vector<8x8xbf16>
    %58 = vector.extract_strided_slice %12 {offsets = [0, 16], sizes = [128, 8], strides = [1, 1]} : vector<128x32xbf16> to vector<128x8xbf16>
    %59 = vector.extract_strided_slice %14 {offsets = [0, 16], sizes = [128, 8], strides = [1, 1]} : vector<128x32xbf16> to vector<128x8xbf16>
    %cst_24 = arith.constant dense<0.000000e+00> : vector<8x128xf32>
    %60 = tpu.matmul %57, %58, %cst_24 {dimension_numbers = #tpu.dot_dimension_numbers<[1], [1], [0], [0], [0, 0, 1, 0], [], []>} : vector<8x8xbf16>, vector<128x8xbf16>, vector<8x128xf32> -> vector<8x128xf32>
    %61 = tpu.iota {dimensions = array<i32: 1>} : vector<8x128xi32>
    %c16_i32_25 = arith.constant 16 : i32
    %62 = vector.broadcast %c16_i32_25 : i32 to vector<8x128xi32>
    %63 = arith.cmpi slt, %61, %62 : vector<8x128xi32>
    %cst_26 = arith.constant -1.000000e+30 : f32
    %64 = vector.broadcast %cst_26 : f32 to vector<8x128xf32>
    %65 = arith.select %63, %60, %64 : vector<8x128xi1>, vector<8x128xf32>
    %cst_27 = arith.constant dense<0xFF800000> : vector<8xf32>
    %66 = vector.multi_reduction <maximumf>, %65, %cst_27 [1] : vector<8x128xf32> to vector<8xf32>
    %67 = vector.shape_cast %66 : vector<8xf32> to vector<8x1xf32>
    %68 = vector.broadcast %67 : vector<8x1xf32> to vector<8x128xf32>
    %69 = arith.subf %65, %68 : vector<8x128xf32>
    %70 = math.exp %69 : vector<8x128xf32>
    %cst_28 = arith.constant dense<0.000000e+00> : vector<8xf32>
    %71 = vector.multi_reduction <add>, %70, %cst_28 [1] : vector<8x128xf32> to vector<8xf32>
    %72 = vector.shape_cast %71 : vector<8xf32> to vector<8x1xf32>
    %73 = tpu.reciprocal %72 : vector<8x1xf32> -> vector<8x1xf32>
    %74 = vector.broadcast %73 : vector<8x1xf32> to vector<8x128xf32>
    %75 = arith.mulf %70, %74 : vector<8x128xf32>
    %76 = arith.truncf %75 : vector<8x128xf32> to vector<8x128xbf16>
    %cst_29 = arith.constant dense<0.000000e+00> : vector<8x8xf32>
    %77 = tpu.matmul %76, %59, %cst_29 {dimension_numbers = #tpu.dot_dimension_numbers<[1], [0], [0], [1], [0, 0, 1, 1], [], []>} : vector<8x128xbf16>, vector<128x8xbf16>, vector<8x8xf32> -> vector<8x8xf32>
    %78 = vector.extract_strided_slice %10 {offsets = [0, 24], sizes = [8, 8], strides = [1, 1]} : vector<8x32xbf16> to vector<8x8xbf16>
    %79 = vector.extract_strided_slice %12 {offsets = [0, 24], sizes = [128, 8], strides = [1, 1]} : vector<128x32xbf16> to vector<128x8xbf16>
    %80 = vector.extract_strided_slice %14 {offsets = [0, 24], sizes = [128, 8], strides = [1, 1]} : vector<128x32xbf16> to vector<128x8xbf16>
    %cst_30 = arith.constant dense<0.000000e+00> : vector<8x128xf32>
    %81 = tpu.matmul %78, %79, %cst_30 {dimension_numbers = #tpu.dot_dimension_numbers<[1], [1], [0], [0], [0, 0, 1, 0], [], []>} : vector<8x8xbf16>, vector<128x8xbf16>, vector<8x128xf32> -> vector<8x128xf32>
    %82 = tpu.iota {dimensions = array<i32: 1>} : vector<8x128xi32>
    %c16_i32_31 = arith.constant 16 : i32
    %83 = vector.broadcast %c16_i32_31 : i32 to vector<8x128xi32>
    %84 = arith.cmpi slt, %82, %83 : vector<8x128xi32>
    %cst_32 = arith.constant -1.000000e+30 : f32
    %85 = vector.broadcast %cst_32 : f32 to vector<8x128xf32>
    %86 = arith.select %84, %81, %85 : vector<8x128xi1>, vector<8x128xf32>
    %cst_33 = arith.constant dense<0xFF800000> : vector<8xf32>
    %87 = vector.multi_reduction <maximumf>, %86, %cst_33 [1] : vector<8x128xf32> to vector<8xf32>
    %88 = vector.shape_cast %87 : vector<8xf32> to vector<8x1xf32>
    %89 = vector.broadcast %88 : vector<8x1xf32> to vector<8x128xf32>
    %90 = arith.subf %86, %89 : vector<8x128xf32>
    %91 = math.exp %90 : vector<8x128xf32>
    %cst_34 = arith.constant dense<0.000000e+00> : vector<8xf32>
    %92 = vector.multi_reduction <add>, %91, %cst_34 [1] : vector<8x128xf32> to vector<8xf32>
    %93 = vector.shape_cast %92 : vector<8xf32> to vector<8x1xf32>
    %94 = tpu.reciprocal %93 : vector<8x1xf32> -> vector<8x1xf32>
    %95 = vector.broadcast %94 : vector<8x1xf32> to vector<8x128xf32>
    %96 = arith.mulf %91, %95 : vector<8x128xf32>
    %97 = arith.truncf %96 : vector<8x128xf32> to vector<8x128xbf16>
    %cst_35 = arith.constant dense<0.000000e+00> : vector<8x8xf32>
    %98 = tpu.matmul %97, %80, %cst_35 {dimension_numbers = #tpu.dot_dimension_numbers<[1], [0], [0], [1], [0, 0, 1, 1], [], []>} : vector<8x128xbf16>, vector<128x8xbf16>, vector<8x8xf32> -> vector<8x8xf32>
    %99 = tpu.concatenate %35, %56, %77, %98 in 1 : vector<8x8xf32>, vector<8x8xf32>, vector<8x8xf32>, vector<8x8xf32> -> vector<8x32xf32>
    %100 = arith.truncf %99 : vector<8x32xf32> to vector<8x32xbf16>
    %c0_36 = arith.constant 0 : index
    %c0_37 = arith.constant 0 : index
    %101 = vector.load %arg7[%c0_36, %c0_37] : memref<32x32xbf16, #tpu.memory_space<vmem>>, vector<32x32xbf16>
    %cst_38 = arith.constant dense<0.000000e+00> : vector<8x32xf32>
    %102 = tpu.matmul %100, %101, %cst_38 {dimension_numbers = #tpu.dot_dimension_numbers<[1], [0], [0], [1], [0, 0, 1, 1], [], []>} : vector<8x32xbf16>, vector<32x32xbf16>, vector<8x32xf32> -> vector<8x32xf32>
    %c0_39 = arith.constant 0 : index
    %c0_40 = arith.constant 0 : index
    %103 = vector.load %arg8[%c0_39, %c0_40] : memref<1x32xbf16, #tpu.memory_space<vmem>>, vector<1x32xbf16>
    %104 = arith.extf %103 : vector<1x32xbf16> to vector<1x32xf32>
    %105 = vector.broadcast %104 : vector<1x32xf32> to vector<8x32xf32>
    %106 = arith.addf %102, %105 : vector<8x32xf32>
    %107 = arith.truncf %106 : vector<8x32xf32> to vector<8x32xbf16>
    %c0_41 = arith.constant 0 : index
    %c0_42 = arith.constant 0 : index
    %c0_43 = arith.constant 0 : index
    %108 = vector.load %arg9[%c0_41, %c0_42, %c0_43] : memref<1x8x32xbf16, #tpu.memory_space<vmem>>, vector<1x8x32xbf16>
    %109 = vector.shape_cast %108 : vector<1x8x32xbf16> to vector<8x32xbf16>
    %110 = vector.shape_cast %107 : vector<8x32xbf16> to vector<1x8x32xbf16>
    tpu.vector_store %arg9[%c0_41, %c0_42, %c0_43], %110 {strides = array<i32>} : memref<1x8x32xbf16, #tpu.memory_space<vmem>>, vector<1x8x32xbf16>,
    return
  }
  func.func @transform_0(%arg0: i32, %arg1: i32) -> (i32, i32, i32) {
    %c0_i32 = arith.constant 0 : i32
    %c0_i32_0 = arith.constant 0 : i32
    return %arg0, %arg1, %c0_i32 : i32, i32, i32
  }
  func.func @transform_1(%arg0: i32, %arg1: i32) -> (i32, i32, i32) {
    %c0_i32 = arith.constant 0 : i32
    %c0_i32_0 = arith.constant 0 : i32
    %c0_i32_1 = arith.constant 0 : i32
    return %arg0, %c0_i32, %c0_i32_0 : i32, i32, i32
  }
  func.func @transform_2(%arg0: i32, %arg1: i32) -> (i32, i32, i32) {
    %c0_i32 = arith.constant 0 : i32
    %c0_i32_0 = arith.constant 0 : i32
    %c0_i32_1 = arith.constant 0 : i32
    return %arg0, %c0_i32, %c0_i32_0 : i32, i32, i32
  }
  func.func @transform_3(%arg0: i32, %arg1: i32) -> (i32, i32) {
    %c0_i32 = arith.constant 0 : i32
    %c0_i32_0 = arith.constant 0 : i32
    %c0_i32_1 = arith.constant 0 : i32
    return %c0_i32, %c0_i32_0 : i32, i32
  }
  func.func @transform_4(%arg0: i32, %arg1: i32) -> (i32, i32) {
    %c0_i32 = arith.constant 0 : i32
    %c0_i32_0 = arith.constant 0 : i32
    %c0_i32_1 = arith.constant 0 : i32
    return %c0_i32, %c0_i32_0 : i32, i32
  }
  func.func @transform_5(%arg0: i32, %arg1: i32) -> (i32, i32) {
    %c0_i32 = arith.constant 0 : i32
    %c0_i32_0 = arith.constant 0 : i32
    %c0_i32_1 = arith.constant 0 : i32
    return %c0_i32, %c0_i32_0 : i32, i32
  }
  func.func @transform_6(%arg0: i32, %arg1: i32) -> (i32, i32) {
    %c0_i32 = arith.constant 0 : i32
    %c0_i32_0 = arith.constant 0 : i32
    %c0_i32_1 = arith.constant 0 : i32
    return %c0_i32, %c0_i32_0 : i32, i32
  }
  func.func @transform_7(%arg0: i32, %arg1: i32) -> (i32, i32, i32) {
    %c0_i32 = arith.constant 0 : i32
    %c0_i32_0 = arith.constant 0 : i32
    return %arg0, %arg1, %c0_i32 : i32, i32, i32
  }
}

</mosaic_0001>

<llo_original>
// kernel: tpu_custom_call.1
$region0: #{tpu_custom_call.1}
  #allocation0 [shape = 'u32[]', space=smem, size = 0x4, offset = 0x4, fixed_abs, tag = 'smem constant byte address 0x4 - core index']
  #allocation1 [shape = 'u32[144,128]{1,0:T(1,128)}', space=vmem, size = 0x12000, scoped, tag = 'internal scratch']
  %s0 = inlined_call_operand.vmem [shape: bf16[2,8,32], index: 0, kind: input, shape index: {}]
  %s1 = inlined_call_operand.vmem [shape: bf16[2,128,32], index: 1, kind: input, shape index: {}]
  %s2 = inlined_call_operand.vmem [shape: bf16[2,128,32], index: 2, kind: input, shape index: {}]
  %s3 = inlined_call_operand.vmem [shape: bf16[32,32], index: 3, kind: input, shape index: {}]
  %s4 = inlined_call_operand.vmem [shape: bf16[1,32], index: 4, kind: input, shape index: {}]
  %s5 = inlined_call_operand.vmem [shape: bf16[32,32], index: 5, kind: input, shape index: {}]
  %s6 = inlined_call_operand.vmem [shape: bf16[1,32], index: 6, kind: input, shape index: {}]
  %s7 = inlined_call_operand.hbm [shape: bf16[2,8,32], index: 7, kind: output, shape index: {}]
  %s8 = sld [smem:[#allocation0]]
  $region61: #{tpu_custom_call.1} parent=0
    _
  %s10 = ssub.s32 1, %s8
  %s11 = scalar_select 0, %s10, %s8
  $region1: #{tpu_custom_call.1} parent=0
    #allocation2 [shape = 'u8[4096]{0}', space=vmem, size = 0x1000, scoped, tag = 'output window, operand 0']
    #allocation3 [shape = 's32[2]{0}', space=sflag, size = 0x8, scoped, tag = 'scoped memory for tpu_custom_call.1']
    %12 = vsyncpa [#allocation3], 0
    %s13 = scalar_lea.sflag [#allocation3], 1
    %14 = vsyncpa %s13, 0
    loop: start=0, step=1, limit=4
    $region2: #{tpu_custom_call.1} parent=1 // loop_pre_header
      _
    $region3: #{tpu_custom_call.1} parent=1 // loop_header
      %s16 = sphi 0, %s20
      %p17 = scmp.ge.s32.totalorder %s16, 4
      %s23 = sphi 0, %s35
      %s24 = sphi 0, %s31
      %s25 = sphi 0, %s23
      %s26 = sphi 0, %s24
      %s27 = sphi 0, %s25
      %s28 = sphi 0, %s26
      %s40 = sphi 0, %s42
      %s43 = sphi 0, %s40
      %s44 = sphi 0, %s43
      %s60 = sphi 0, %s44
      %s66 = sphi 0, %s68
      %s69 = sphi 0, %s66
      %s70 = sphi 0, %s69
      %s86 = sphi 0, %s70
      %s92 = sphi 0, %s94
      %s95 = sphi 0, %s92
      %s96 = sphi 0, %s95
      %s112 = sphi 0, %s96
      %s116 = sphi 0, %s116
      %s118 = sphi 0, %s116
      %s119 = sphi 0, %s118
      %s133 = sphi 0, %s119
      %s137 = sphi 0, %s137
      %s139 = sphi 0, %s137
      %s140 = sphi 0, %s139
      %s154 = sphi 0, %s140
      %s158 = sphi 0, %s158
      %s160 = sphi 0, %s158
      %s161 = sphi 0, %s160
      %s175 = sphi 0, %s161
      %s179 = sphi 0, %s179
      %s181 = sphi 0, %s179
      %s182 = sphi 0, %s181
      %s196 = sphi 0, %s182
      %s204 = sphi 0, %s206
      %s207 = sphi 0, %s204
      %s208 = sphi 0, %s207
      %s224 = sphi 0, %s208
    $region4: #{tpu_custom_call.1} parent=1 // loop_header_branch
      %19 = sbr.rel (%p17) target = $region8
    $region5: #{tpu_custom_call.1} parent=1 // loop_body
      %s21 = ssub.s32 %s16, 1
      %s22 = ssub.s32 %s16, 2
      %s29 = sadd.s32 1, %s24
      %p30 = scmp.ge.s32.totalorder %s29, 1
      %s31 = scalar_select %p30, 0, %s29
      %s32 = sadd.s32 1, %s23
      %s33 = scalar_select %p30, %s32, %s23
      %p34 = scmp.ge.s32.totalorder %s33, 2
      %s35 = scalar_select %p34, 0, %s33
      %s36 = ssub.s32 %s23, %s35
      %s37 = ssub.s32 %s24, %s31
      %s38 = sor.u32 %s36, %s37
      %p39 = scmp.eq.s32.totalorder %s38, 0
      %s41 = sadd.s32 %s40, 1
      %s42 = scalar_select %p39, %s40, %s41
      %p45 = pneg %p39
      %p46 = scmp.eq.s32.totalorder %s16, 1
      %p47 = por %p45, %p46
      %p48 = scmp.ne.s32.totalorder %s40, %s43
      %p49 = scmp.eq.s32.totalorder %s16, 0
      %p50 = por %p48, %p49
      %p51 = scmp.ne.s32.totalorder %s40, %s43
      %p52 = scmp.eq.s32.totalorder %s21, 1
      %p53 = por %p51, %p52
      %p54 = scmp.ne.s32.totalorder %s43, %s44
      %p55 = scmp.eq.s32.totalorder %s21, 0
      %p56 = por %p54, %p55
      %p57 = scmp.ne.s32.totalorder %s43, %s44
      %p58 = scmp.eq.s32.totalorder %s22, 1
      %p59 = por %p57, %p58
      %p61 = scmp.ne.s32.totalorder %s44, %s60
      %p62 = scmp.eq.s32.totalorder %s22, 0
      %p63 = por %p61, %p62
      %s64 = ssub.s32 %s23, %s35
      %p65 = scmp.eq.s32.totalorder %s64, 0
      %s67 = sadd.s32 %s66, 1
      %s68 = scalar_select %p65, %s66, %s67
      %p71 = pneg %p65
      %p72 = scmp.eq.s32.totalorder %s16, 1
      %p73 = por %p71, %p72
      %p74 = scmp.ne.s32.totalorder %s66, %s69
      %p75 = scmp.eq.s32.totalorder %s16, 0
      %p76 = por %p74, %p75
      %p77 = scmp.ne.s32.totalorder %s66, %s69
      %p78 = scmp.eq.s32.totalorder %s21, 1
      %p79 = por %p77, %p78
      %p80 = scmp.ne.s32.totalorder %s69, %s70
      %p81 = scmp.eq.s32.totalorder %s21, 0
      %p82 = por %p80, %p81
      %p83 = scmp.ne.s32.totalorder %s69, %s70
      %p84 = scmp.eq.s32.totalorder %s22, 1
      %p85 = por %p83, %p84
      %p87 = scmp.ne.s32.totalorder %s70, %s86
      %p88 = scmp.eq.s32.totalorder %s22, 0
      %p89 = por %p87, %p88
      %s90 = ssub.s32 %s23, %s35
      %p91 = scmp.eq.s32.totalorder %s90, 0
      %s93 = sadd.s32 %s92, 1
      %s94 = scalar_select %p91, %s92, %s93
      %p97 = pneg %p91
      %p98 = scmp.eq.s32.totalorder %s16, 1
      %p99 = por %p97, %p98
      %p100 = scmp.ne.s32.totalorder %s92, %s95
      %p101 = scmp.eq.s32.totalorder %s16, 0
      %p102 = por %p100, %p101
      %p103 = scmp.ne.s32.totalorder %s92, %s95
      %p104 = scmp.eq.s32.totalorder %s21, 1
      %p105 = por %p103, %p104
      %p106 = scmp.ne.s32.totalorder %s95, %s96
      %p107 = scmp.eq.s32.totalorder %s21, 0
      %p108 = por %p106, %p107
      %p109 = scmp.ne.s32.totalorder %s95, %s96
      %p110 = scmp.eq.s32.totalorder %s22, 1
      %p111 = por %p109, %p110
      %p113 = scmp.ne.s32.totalorder %s96, %s112
      %p114 = scmp.eq.s32.totalorder %s22, 0
      %p115 = por %p113, %p114
      %s117 = sadd.s32 %s116, 1
      %p120 = scmp.eq.s32.totalorder %s16, 1
      %p121 = scmp.ne.s32.totalorder %s116, %s118
      %p122 = scmp.eq.s32.totalorder %s16, 0
      %p123 = por %p121, %p122
      %p124 = scmp.ne.s32.totalorder %s116, %s118
      %p125 = scmp.eq.s32.totalorder %s21, 1
      %p126 = por %p124, %p125
      %p127 = scmp.ne.s32.totalorder %s118, %s119
      %p128 = scmp.eq.s32.totalorder %s21, 0
      %p129 = por %p127, %p128
      %p130 = scmp.ne.s32.totalorder %s118, %s119
      %p131 = scmp.eq.s32.totalorder %s22, 1
      %p132 = por %p130, %p131
      %p134 = scmp.ne.s32.totalorder %s119, %s133
      %p135 = scmp.eq.s32.totalorder %s22, 0
      %p136 = por %p134, %p135
      %s138 = sadd.s32 %s137, 1
      %p141 = scmp.eq.s32.totalorder %s16, 1
      %p142 = scmp.ne.s32.totalorder %s137, %s139
      %p143 = scmp.eq.s32.totalorder %s16, 0
      %p144 = por %p142, %p143
      %p145 = scmp.ne.s32.totalorder %s137, %s139
      %p146 = scmp.eq.s32.totalorder %s21, 1
      %p147 = por %p145, %p146
      %p148 = scmp.ne.s32.totalorder %s139, %s140
      %p149 = scmp.eq.s32.totalorder %s21, 0
      %p150 = por %p148, %p149
      %p151 = scmp.ne.s32.totalorder %s139, %s140
      %p152 = scmp.eq.s32.totalorder %s22, 1
      %p153 = por %p151, %p152
      %p155 = scmp.ne.s32.totalorder %s140, %s154
      %p156 = scmp.eq.s32.totalorder %s22, 0
      %p157 = por %p155, %p156
      %s159 = sadd.s32 %s158, 1
      %p162 = scmp.eq.s32.totalorder %s16, 1
      %p163 = scmp.ne.s32.totalorder %s158, %s160
      %p164 = scmp.eq.s32.totalorder %s16, 0
      %p165 = por %p163, %p164
      %p166 = scmp.ne.s32.totalorder %s158, %s160
      %p167 = scmp.eq.s32.totalorder %s21, 1
      %p168 = por %p166, %p167
      %p169 = scmp.ne.s32.totalorder %s160, %s161
      %p170 = scmp.eq.s32.totalorder %s21, 0
      %p171 = por %p169, %p170
      %p172 = scmp.ne.s32.totalorder %s160, %s161
      %p173 = scmp.eq.s32.totalorder %s22, 1
      %p174 = por %p172, %p173
      %p176 = scmp.ne.s32.totalorder %s161, %s175
      %p177 = scmp.eq.s32.totalorder %s22, 0
      %p178 = por %p176, %p177
      %s180 = sadd.s32 %s179, 1
      %p183 = scmp.eq.s32.totalorder %s16, 1
      %p184 = scmp.ne.s32.totalorder %s179, %s181
      %p185 = scmp.eq.s32.totalorder %s16, 0
      %p186 = por %p184, %p185
      %p187 = scmp.ne.s32.totalorder %s179, %s181
      %p188 = scmp.eq.s32.totalorder %s21, 1
      %p189 = por %p187, %p188
      %p190 = scmp.ne.s32.totalorder %s181, %s182
      %p191 = scmp.eq.s32.totalorder %s21, 0
      %p192 = por %p190, %p191
      %p193 = scmp.ne.s32.totalorder %s181, %s182
      %p194 = scmp.eq.s32.totalorder %s22, 1
      %p195 = por %p193, %p194
      %p197 = scmp.ne.s32.totalorder %s182, %s196
      %p198 = scmp.eq.s32.totalorder %s22, 0
      %p199 = por %p197, %p198
      %s200 = ssub.s32 %s23, %s35
      %s201 = ssub.s32 %s24, %s31
      %s202 = sor.u32 %s200, %s201
      %p203 = scmp.eq.s32.totalorder %s202, 0
      %s205 = sadd.s32 %s204, 1
      %s206 = scalar_select %p203, %s204, %s205
      %p209 = pneg %p203
      %p210 = scmp.eq.s32.totalorder %s16, 1
      %p211 = por %p209, %p210
      %p212 = scmp.ne.s32.totalorder %s204, %s207
      %p213 = scmp.eq.s32.totalorder %s16, 0
      %p214 = por %p212, %p213
      %p215 = scmp.ne.s32.totalorder %s204, %s207
      %p216 = scmp.eq.s32.totalorder %s21, 1
      %p217 = por %p215, %p216
      %p218 = scmp.ne.s32.totalorder %s207, %s208
      %p219 = scmp.eq.s32.totalorder %s21, 0
      %p220 = por %p218, %p219
      %p221 = scmp.ne.s32.totalorder %s207, %s208
      %p222 = scmp.eq.s32.totalorder %s22, 1
      %p223 = por %p221, %p222
      %p225 = scmp.ne.s32.totalorder %s208, %s224
      %p226 = scmp.eq.s32.totalorder %s22, 0
      %p227 = por %p225, %p226
      %p228 = scmp.le.s32.totalorder 1, %s16
      %p229 = scmp.lt.s32.totalorder %s16, 3
      %p230 = pnand %p228, %p229
      %p231 = pneg %p230
      // Predicated region
      $region9: #{tpu_custom_call.1} parent=5 // pred_check
        _
      $region10: #{tpu_custom_call.1} parent=5 // pred_check_branch
        %233 = sbr.rel (%p230) target = $region12
      $region11: #{tpu_custom_call.1} parent=5 // pred_region
        %s234 = ssub.s32 %s16, 1
        // Predicated region
        $region13: #{tpu_custom_call.1} parent=11 // pred_check
          %p235 = pneg %p129
        $region14: #{tpu_custom_call.1} parent=11 // pred_check_branch
          %237 = sbr.rel (%p235) target = $region16
        $region15: #{tpu_custom_call.1} parent=11 // pred_region
          _
        $region16: #{tpu_custom_call.1} parent=11 // pred_fallthru
          _
        // Predicated region
        $region17: #{tpu_custom_call.1} parent=11 // pred_check
          %p238 = pneg %p150
        $region18: #{tpu_custom_call.1} parent=11 // pred_check_branch
          %240 = sbr.rel (%p238) target = $region20
        $region19: #{tpu_custom_call.1} parent=11 // pred_region
          _
        $region20: #{tpu_custom_call.1} parent=11 // pred_fallthru
          _
        // Predicated region
        $region21: #{tpu_custom_call.1} parent=11 // pred_check
          %p241 = pneg %p171
        $region22: #{tpu_custom_call.1} parent=11 // pred_check_branch
          %243 = sbr.rel (%p241) target = $region24
        $region23: #{tpu_custom_call.1} parent=11 // pred_region
          _
        $region24: #{tpu_custom_call.1} parent=11 // pred_fallthru
          _
        // Predicated region
        $region25: #{tpu_custom_call.1} parent=11 // pred_check
          %p244 = pneg %p192
        $region26: #{tpu_custom_call.1} parent=11 // pred_check_branch
          %246 = sbr.rel (%p244) target = $region28
        $region27: #{tpu_custom_call.1} parent=11 // pred_region
          _
        $region28: #{tpu_custom_call.1} parent=11 // pred_fallthru
          _
      $region12: #{tpu_custom_call.1} parent=5 // pred_fallthru
        _
      %p247 = scmp.lt.s32.totalorder %s16, 2
      // Predicated region
      $region29: #{tpu_custom_call.1} parent=5 // pred_check
        %p248 = pneg %p247
      $region30: #{tpu_custom_call.1} parent=5 // pred_check_branch
        %250 = sbr.rel (%p248) target = $region32
      $region31: #{tpu_custom_call.1} parent=5 // pred_region
        // Predicated region
        $region33: #{tpu_custom_call.1} parent=31 // pred_check
          %p251 = pneg %p50
        $region34: #{tpu_custom_call.1} parent=31 // pred_check_branch
          %253 = sbr.rel (%p251) target = $region36
        $region35: #{tpu_custom_call.1} parent=31 // pred_region
          %p254 = scmp.lt.s32.totalorder %s23, 1
          %s255 = scalar_select %p254, %s23, 1
          %p256 = scmp.lt.s32.totalorder %s24, 0
          %s257 = scalar_select %p256, %s24, 0
          %s258 = sadd.s32 %s257, %s255
          %s259 = smul.addr %s258, 4
          %s260 = scalar_lea.vmem %s0, %s259
        $region36: #{tpu_custom_call.1} parent=31 // pred_fallthru
          _
        // Predicated region
        $region37: #{tpu_custom_call.1} parent=31 // pred_check
          %p261 = pneg %p76
        $region38: #{tpu_custom_call.1} parent=31 // pred_check_branch
          %263 = sbr.rel (%p261) target = $region40
        $region39: #{tpu_custom_call.1} parent=31 // pred_region
          %p264 = scmp.lt.s32.totalorder %s23, 1
          %s265 = scalar_select %p264, %s23, 1
          %s266 = smul.addr %s265, 16
          %s267 = smul.addr %s266, 4
          %s268 = scalar_lea.vmem %s1, %s267
        $region40: #{tpu_custom_call.1} parent=31 // pred_fallthru
          _
        // Predicated region
        $region41: #{tpu_custom_call.1} parent=31 // pred_check
          %p269 = pneg %p102
        $region42: #{tpu_custom_call.1} parent=31 // pred_check_branch
          %271 = sbr.rel (%p269) target = $region44
        $region43: #{tpu_custom_call.1} parent=31 // pred_region
          %p272 = scmp.lt.s32.totalorder %s23, 1
          %s273 = scalar_select %p272, %s23, 1
          %s274 = smul.addr %s273, 16
          %s275 = smul.addr %s274, 4
          %s276 = scalar_lea.vmem %s2, %s275
        $region44: #{tpu_custom_call.1} parent=31 // pred_fallthru
          _
      $region32: #{tpu_custom_call.1} parent=5 // pred_fallthru
        _
      %p277 = scmp.le.s32.totalorder 1, %s16
      %p278 = scmp.lt.s32.totalorder %s16, 3
      %p279 = pnand %p277, %p278
      %p280 = pneg %p279
      // Predicated region
      $region45: #{tpu_custom_call.1} parent=5 // pred_check
        _
      $region46: #{tpu_custom_call.1} parent=5 // pred_check_branch
        %282 = sbr.rel (%p279) target = $region48
      $region47: #{tpu_custom_call.1} parent=5 // pred_region
        %s283 = ssub.s32 %s16, 1
        %p284 = scmp.lt.s32.totalorder %s25, 1
        %s285 = scalar_select %p284, %s25, 1
        %p286 = scmp.lt.s32.totalorder %s26, 0
        %s287 = scalar_select %p286, %s26, 0
        %s288 = sadd.s32 %s287, %s285
        %s289 = smul.addr %s288, 4
        %s290 = scalar_lea.vmem %s0, %s289
        %p291 = pneg %p56
        %p292 = pneg %p53
        %p293 = scmp.lt.s32.totalorder %s25, 1
        %s294 = scalar_select %p293, %s25, 1
        %s295 = smul.addr %s294, 16
        %s296 = smul.addr %s295, 4
        %s297 = scalar_lea.vmem %s1, %s296
        %p298 = pneg %p82
        %p299 = pneg %p79
        %p300 = scmp.lt.s32.totalorder %s25, 1
        %s301 = scalar_select %p300, %s25, 1
        %s302 = smul.addr %s301, 16
        %s303 = smul.addr %s302, 4
        %s304 = scalar_lea.vmem %s2, %s303
        %p305 = pneg %p108
        %p306 = pneg %p105
        %p307 = pneg %p129
        %p308 = pneg %p126
        %p309 = pneg %p150
        %p310 = pneg %p147
        %p311 = pneg %p171
        %p312 = pneg %p168
        %p313 = pneg %p192
        %p314 = pneg %p189
        %p315 = pneg %p220
        %p316 = pneg %p217
        %s317 = sand.u32 %s207, 1
        %s318 = scalar_lea.sflag [#allocation3], %s317
        %s319 = sand.u32 %s207, 1
        %s320 = smul.addr %s319, 4
        %s321 = scalar_lea.vmem [#allocation2], %s320
        %p322 = scmp.lt.s32.totalorder %s25, 1
        %s323 = scalar_select %p322, %s25, 1
        %p324 = scmp.lt.s32.totalorder %s26, 0
        %s325 = scalar_select %p324, %s26, 0
        %s326 = sadd.s32 %s325, %s323
        %s327 = smul.addr %s326, 4
        %s328 = scalar_lea.vmem %s0, %s327
        %p329 = scmp.lt.s32.totalorder %s25, 1
        %s330 = scalar_select %p329, %s25, 1
        %s331 = smul.addr %s330, 16
        %s332 = smul.addr %s331, 4
        %s333 = scalar_lea.vmem %s1, %s332
        %p334 = scmp.lt.s32.totalorder %s25, 1
        %s335 = scalar_select %p334, %s25, 1
        %s336 = smul.addr %s335, 16
        %s337 = smul.addr %s336, 4
        %s338 = scalar_lea.vmem %s2, %s337
        %v340 = vld [vmem:[%s328] sm:$0xf]
        %v341 = vld [vmem:[%s3] sm:$0xf]
        %v342 = vld [vmem:[%s3 + $0x4] sm:$0xf]
        %v343 = vld [vmem:[%s3 + $0x8] sm:$0xf]
        %v344 = vld [vmem:[%s3 + $0xc] sm:$0xf]
        %v345 = vld [vmem:[%s4] sm:$0x1]
        %v346 = vunpack.c.l.bf16 %v345
        %v347 = vlaneseq
        %v348 = vshrl.u32 %v347, 7
        %v349 = vsub.s32 0, %v348
        %v350 = vrot.slane %v346, %v349
        %v355 = vunpack.c.l.b16 %v341
        %v356 = vunpack.c.l.b16 %v342
        %v357 = vunpack.c.l.b16 %v343
        %v358 = vunpack.c.l.b16 %v344
        %v359 = vpack.c.b16 %v356, %v355
        %v360 = vpack.c.b16 %v358, %v357
        %vm363 = vcmask 261120
        %v365 = vsel %vm363, %v340, 0
        %367 = vmatprep.subr.bf16.mxu0 0
        %368 = vmatpush1.bf16.msra.mxu0 %v359
        %369 = vmatprep.subr.bf16.mxu0 0
        %370 = vmatpush1.bf16.msra.mxu0 %v360
        %371 = vmatprep.subr.bf16.mxu0 0
        %372 = vmatpush1.bf16.msra.mxu0 0
        %373 = vmatprep.subr.bf16.mxu0 0
        %374 = vmatpush1.bf16.msra.mxu0 0
        %375 = vmatprep.subr.bf16.mxu0 0
        %376 = vmatpush1.bf16.msra.mxu0 0
        %377 = vmatprep.subr.bf16.mxu0 0
        %378 = vmatpush1.bf16.msra.mxu0 0
        %379 = vmatprep.subr.bf16.mxu0 0
        %380 = vmatpush1.bf16.msra.mxu0 0
        %381 = vmatprep.subr.bf16.mxu0 0
        %382 = vmatpush1.bf16.msra.mxu0 0
        %383 = vmatprep.subr.bf16.mxu0 0
        %384 = vmatpush1.bf16.msra.mxu0 0
        %385 = vmatprep.subr.bf16.mxu0 0
        %386 = vmatpush1.bf16.msra.mxu0 0
        %387 = vmatprep.subr.bf16.mxu0 0
        %388 = vmatpush1.bf16.msra.mxu0 0
        %389 = vmatprep.subr.bf16.mxu0 0
        %390 = vmatpush1.bf16.msra.mxu0 0
        %391 = vmatprep.subr.bf16.mxu0 0
        %392 = vmatpush1.bf16.msra.mxu0 0
        %393 = vmatprep.subr.bf16.mxu0 0
        %394 = vmatpush1.bf16.msra.mxu0 0
        %395 = vmatprep.subr.bf16.mxu0 0
        %396 = vmatpush1.bf16.msra.mxu0 0
        %397 = vmatprep.subr.bf16.mxu0 0
        %398 = vmatpush1.bf16.msra.mxu0 0
        %399 = vmatprep.mubr.bf16.mxu0 0
        %400 = vmatmul.mubr.bf16.gmra.mrb[0].mxu0 %v365
        %v401 = vpop.f32.mrb[0].mxu0
        %v402 = vadd.f32 %v350, %v401
        %v403 = vpop.f32.mrb[0].mxu0
        %v404 = vpop.f32.mrb[0].mxu0
        %v405 = vpop.f32.mrb[0].mxu0
        %406 = vdwg.mxu0
        %v407 = vmul.f32 %v402, 0.35355338
        %v408 = vpack.c.bf16 %v407, %v407
        %v409 = vld [vmem:[%s333] sm:$0xf]
        %v410 = vld [vmem:[%s333 + $0x4] sm:$0xf]
        %v411 = vld [vmem:[%s333 + $0x8] sm:$0xf]
        %v412 = vld [vmem:[%s333 + $0xc] sm:$0xf]
        %v413 = vld [vmem:[%s333 + $0x10] sm:$0xf]
        %v414 = vld [vmem:[%s333 + $0x14] sm:$0xf]
        %v415 = vld [vmem:[%s333 + $0x18] sm:$0xf]
        %v416 = vld [vmem:[%s333 + $0x1c] sm:$0xf]
        %v417 = vld [vmem:[%s333 + $0x20] sm:$0xf]
        %v418 = vld [vmem:[%s333 + $0x24] sm:$0xf]
        %v419 = vld [vmem:[%s333 + $0x28] sm:$0xf]
        %v420 = vld [vmem:[%s333 + $0x2c] sm:$0xf]
        %v421 = vld [vmem:[%s333 + $0x30] sm:$0xf]
        %v422 = vld [vmem:[%s333 + $0x34] sm:$0xf]
        %v423 = vld [vmem:[%s333 + $0x38] sm:$0xf]
        %v424 = vld [vmem:[%s333 + $0x3c] sm:$0xf]
        %v425 = vld [vmem:[%s338] sm:$0xf]
        %v426 = vld [vmem:[%s338 + $0x4] sm:$0xf]
        %v427 = vld [vmem:[%s338 + $0x8] sm:$0xf]
        %v428 = vld [vmem:[%s338 + $0xc] sm:$0xf]
        %v429 = vld [vmem:[%s338 + $0x10] sm:$0xf]
        %v430 = vld [vmem:[%s338 + $0x14] sm:$0xf]
        %v431 = vld [vmem:[%s338 + $0x18] sm:$0xf]
        %v432 = vld [vmem:[%s338 + $0x1c] sm:$0xf]
        %v433 = vld [vmem:[%s338 + $0x20] sm:$0xf]
        %v434 = vld [vmem:[%s338 + $0x24] sm:$0xf]
        %v435 = vld [vmem:[%s338 + $0x28] sm:$0xf]
        %v436 = vld [vmem:[%s338 + $0x2c] sm:$0xf]
        %v437 = vld [vmem:[%s338 + $0x30] sm:$0xf]
        %v438 = vld [vmem:[%s338 + $0x34] sm:$0xf]
        %v439 = vld [vmem:[%s338 + $0x38] sm:$0xf]
        %v440 = vld [vmem:[%s338 + $0x3c] sm:$0xf]
        %v457 = vunpack.c.l.b16 %v409
        %v458 = vunpack.c.l.b16 %v410
        %v459 = vunpack.c.l.b16 %v411
        %v460 = vunpack.c.l.b16 %v412
        %v461 = vunpack.c.l.b16 %v413
        %v462 = vunpack.c.l.b16 %v414
        %v463 = vunpack.c.l.b16 %v415
        %v464 = vunpack.c.l.b16 %v416
        %v465 = vunpack.c.l.b16 %v417
        %v466 = vunpack.c.l.b16 %v418
        %v467 = vunpack.c.l.b16 %v419
        %v468 = vunpack.c.l.b16 %v420
        %v469 = vunpack.c.l.b16 %v421
        %v470 = vunpack.c.l.b16 %v422
        %v471 = vunpack.c.l.b16 %v423
        %v472 = vunpack.c.l.b16 %v424
        %v473 = vpack.c.b16 %v458, %v457
        %v474 = vpack.c.b16 %v460, %v459
        %v475 = vpack.c.b16 %v462, %v461
        %v476 = vpack.c.b16 %v464, %v463
        %v477 = vpack.c.b16 %v466, %v465
        %v478 = vpack.c.b16 %v468, %v467
        %v479 = vpack.c.b16 %v470, %v469
        %v480 = vpack.c.b16 %v472, %v471
        %vm481 = vcmask 64512
        %v483 = vsel %vm481, %v408, 0
        %v486 = vsel %vm481, %v473, 0
        %v489 = vsel %vm481, %v474, 0
        %v492 = vsel %vm481, %v475, 0
        %v495 = vsel %vm481, %v476, 0
        %v498 = vsel %vm481, %v477, 0
        %v501 = vsel %vm481, %v478, 0
        %v504 = vsel %vm481, %v479, 0
        %v507 = vsel %vm481, %v480, 0
        %509 = vmatprep.subr.bf16.mxu0 0
        %510 = vmatpush1.bf16.xpose.msra.mxu0 %v486
        %511 = vmatprep.subr.bf16.mxu0 0
        %512 = vmatpush1.bf16.xpose.msra.mxu0 %v489
        %513 = vmatprep.subr.bf16.mxu0 0
        %514 = vmatpush1.bf16.xpose.msra.mxu0 %v492
        %515 = vmatprep.subr.bf16.mxu0 0
        %516 = vmatpush1.bf16.xpose.msra.mxu0 %v495
        %517 = vmatprep.subr.bf16.mxu0 0
        %518 = vmatpush1.bf16.xpose.msra.mxu0 %v498
        %519 = vmatprep.subr.bf16.mxu0 0
        %520 = vmatpush1.bf16.xpose.msra.mxu0 %v501
        %521 = vmatprep.subr.bf16.mxu0 0
        %522 = vmatpush1.bf16.xpose.msra.mxu0 %v504
        %523 = vmatprep.subr.bf16.mxu0 0
        %524 = vmatpush1.bf16.xpose.msra.mxu0 %v507
        %525 = vmatprep.subr.bf16.mxu0 0
        %526 = vmatpush1.bf16.xpose.msra.mxu0 0
        %527 = vmatprep.subr.bf16.mxu0 0
        %528 = vmatpush1.bf16.xpose.msra.mxu0 0
        %529 = vmatprep.subr.bf16.mxu0 0
        %530 = vmatpush1.bf16.xpose.msra.mxu0 0
        %531 = vmatprep.subr.bf16.mxu0 0
        %532 = vmatpush1.bf16.xpose.msra.mxu0 0
        %533 = vmatprep.subr.bf16.mxu0 0
        %534 = vmatpush1.bf16.xpose.msra.mxu0 0
        %535 = vmatprep.subr.bf16.mxu0 0
        %536 = vmatpush1.bf16.xpose.msra.mxu0 0
        %537 = vmatprep.subr.bf16.mxu0 0
        %538 = vmatpush1.bf16.xpose.msra.mxu0 0
        %539 = vmatprep.subr.bf16.mxu0 0
        %540 = vmatpush1.bf16.xpose.msra.mxu0 0
        %541 = vmatprep.mubr.bf16.mxu0 0
        %542 = vmatmul.mubr.bf16.gmra.mrb[0].mxu0 %v483
        %v543 = vpop.f32.mrb[0].mxu0
        %v544 = vadd.f32 0.0, %v543
        %v545 = vpop.f32.mrb[0].mxu0
        %v546 = vpop.f32.mrb[0].mxu0
        %v547 = vpop.f32.mrb[0].mxu0
        %548 = vdwg.mxu0
        %v549 = vlaneseq
        %v550 = vand.u32 %v549, 127
        %vm551 = vcmp.lt.s32.totalorder %v550, 16
        %v552 = vsel %vm551, %v544, -1e+30
        %553 = vmax.xlane.f32.xlu0 %v552
        %v554 = vpop.xlane.xlu0 %553
        %v555 = vsub.f32 %v552, %v554
        %v556 = vmul.f32 %v555, 1.442695
        %v557 = vpow.pop %v556
        %558 = vadd.xlane.f32.xlu0 %v557
        %v559 = vpop.xlane.xlu0 %558
        %v560 = vrcp.pop %v559
        %v561 = vmul.f32 %v557, %v560
        %v562 = vpack.c.bf16 %v561, %v561
        %v579 = vunpack.c.l.b16 %v425
        %v580 = vunpack.c.l.b16 %v426
        %v581 = vunpack.c.l.b16 %v427
        %v582 = vunpack.c.l.b16 %v428
        %v583 = vunpack.c.l.b16 %v429
        %v584 = vunpack.c.l.b16 %v430
        %v585 = vunpack.c.l.b16 %v431
        %v586 = vunpack.c.l.b16 %v432
        %v587 = vunpack.c.l.b16 %v433
        %v588 = vunpack.c.l.b16 %v434
        %v589 = vunpack.c.l.b16 %v435
        %v590 = vunpack.c.l.b16 %v436
        %v591 = vunpack.c.l.b16 %v437
        %v592 = vunpack.c.l.b16 %v438
        %v593 = vunpack.c.l.b16 %v439
        %v594 = vunpack.c.l.b16 %v440
        %v595 = vpack.c.b16 %v580, %v579
        %v596 = vpack.c.b16 %v582, %v581
        %v597 = vpack.c.b16 %v584, %v583
        %v598 = vpack.c.b16 %v586, %v585
        %v599 = vpack.c.b16 %v588, %v587
        %v600 = vpack.c.b16 %v590, %v589
        %v601 = vpack.c.b16 %v592, %v591
        %v602 = vpack.c.b16 %v594, %v593
        %611 = vmatprep.subr.bf16.mxu0 0
        %612 = vmatpush1.bf16.msra.mxu0 %v595
        %613 = vmatprep.subr.bf16.mxu0 0
        %614 = vmatpush1.bf16.msra.mxu0 %v596
        %615 = vmatprep.subr.bf16.mxu0 0
        %616 = vmatpush1.bf16.msra.mxu0 %v597
        %617 = vmatprep.subr.bf16.mxu0 0
        %618 = vmatpush1.bf16.msra.mxu0 %v598
        %619 = vmatprep.subr.bf16.mxu0 0
        %620 = vmatpush1.bf16.msra.mxu0 %v599
        %621 = vmatprep.subr.bf16.mxu0 0
        %622 = vmatpush1.bf16.msra.mxu0 %v600
        %623 = vmatprep.subr.bf16.mxu0 0
        %624 = vmatpush1.bf16.msra.mxu0 %v601
        %625 = vmatprep.subr.bf16.mxu0 0
        %626 = vmatpush1.bf16.msra.mxu0 %v602
        %627 = vmatprep.subr.bf16.mxu0 0
        %628 = vmatpush1.bf16.msra.mxu0 0
        %629 = vmatprep.subr.bf16.mxu0 0
        %630 = vmatpush1.bf16.msra.mxu0 0
        %631 = vmatprep.subr.bf16.mxu0 0
        %632 = vmatpush1.bf16.msra.mxu0 0
        %633 = vmatprep.subr.bf16.mxu0 0
        %634 = vmatpush1.bf16.msra.mxu0 0
        %635 = vmatprep.subr.bf16.mxu0 0
        %636 = vmatpush1.bf16.msra.mxu0 0
        %637 = vmatprep.subr.bf16.mxu0 0
        %638 = vmatpush1.bf16.msra.mxu0 0
        %639 = vmatprep.subr.bf16.mxu0 0
        %640 = vmatpush1.bf16.msra.mxu0 0
        %641 = vmatprep.subr.bf16.mxu0 0
        %642 = vmatpush1.bf16.msra.mxu0 0
        %643 = vmatprep.mubr.bf16.mxu0 0
        %644 = vmatmul.mubr.bf16.gmra.mrb[0].mxu0 %v562
        %v645 = vpop.f32.mrb[0].mxu0
        %v646 = vadd.f32 0.0, %v645
        %v647 = vpop.f32.mrb[0].mxu0
        %v648 = vpop.f32.mrb[0].mxu0
        %v649 = vpop.f32.mrb[0].mxu0
        %650 = vdwg.mxu0
        %652 = vrot.lane.b32.xlu0 %v408, 120
        %v653 = vpop.permute.xlu0 %652
        %654 = vrot.lane.b32.xlu0 %v473, 120
        %v655 = vpop.permute.xlu0 %654
        %656 = vrot.lane.b32.xlu0 %v474, 120
        %v657 = vpop.permute.xlu0 %656
        %658 = vrot.lane.b32.xlu0 %v475, 120
        %v659 = vpop.permute.xlu0 %658
        %660 = vrot.lane.b32.xlu0 %v476, 120
        %v661 = vpop.permute.xlu0 %660
        %662 = vrot.lane.b32.xlu0 %v477, 120
        %v663 = vpop.permute.xlu0 %662
        %664 = vrot.lane.b32.xlu0 %v478, 120
        %v665 = vpop.permute.xlu0 %664
        %666 = vrot.lane.b32.xlu0 %v479, 120
        %v667 = vpop.permute.xlu0 %666
        %668 = vrot.lane.b32.xlu0 %v480, 120
        %v669 = vpop.permute.xlu0 %668
        %v671 = vsel %vm481, %v653, 0
        %v674 = vsel %vm481, %v655, 0
        %v677 = vsel %vm481, %v657, 0
        %v680 = vsel %vm481, %v659, 0
        %v683 = vsel %vm481, %v661, 0
        %v686 = vsel %vm481, %v663, 0
        %v689 = vsel %vm481, %v665, 0
        %v692 = vsel %vm481, %v667, 0
        %v695 = vsel %vm481, %v669, 0
        %697 = vmatprep.subr.bf16.mxu0 0
        %698 = vmatpush1.bf16.xpose.msra.mxu0 %v674
        %699 = vmatprep.subr.bf16.mxu0 0
        %700 = vmatpush1.bf16.xpose.msra.mxu0 %v677
        %701 = vmatprep.subr.bf16.mxu0 0
        %702 = vmatpush1.bf16.xpose.msra.mxu0 %v680
        %703 = vmatprep.subr.bf16.mxu0 0
        %704 = vmatpush1.bf16.xpose.msra.mxu0 %v683
        %705 = vmatprep.subr.bf16.mxu0 0
        %706 = vmatpush1.bf16.xpose.msra.mxu0 %v686
        %707 = vmatprep.subr.bf16.mxu0 0
        %708 = vmatpush1.bf16.xpose.msra.mxu0 %v689
        %709 = vmatprep.subr.bf16.mxu0 0
        %710 = vmatpush1.bf16.xpose.msra.mxu0 %v692
        %711 = vmatprep.subr.bf16.mxu0 0
        %712 = vmatpush1.bf16.xpose.msra.mxu0 %v695
        %713 = vmatprep.subr.bf16.mxu0 0
        %714 = vmatpush1.bf16.xpose.msra.mxu0 0
        %715 = vmatprep.subr.bf16.mxu0 0
        %716 = vmatpush1.bf16.xpose.msra.mxu0 0
        %717 = vmatprep.subr.bf16.mxu0 0
        %718 = vmatpush1.bf16.xpose.msra.mxu0 0
        %719 = vmatprep.subr.bf16.mxu0 0
        %720 = vmatpush1.bf16.xpose.msra.mxu0 0
        %721 = vmatprep.subr.bf16.mxu0 0
        %722 = vmatpush1.bf16.xpose.msra.mxu0 0
        %723 = vmatprep.subr.bf16.mxu0 0
        %724 = vmatpush1.bf16.xpose.msra.mxu0 0
        %725 = vmatprep.subr.bf16.mxu0 0
        %726 = vmatpush1.bf16.xpose.msra.mxu0 0
        %727 = vmatprep.subr.bf16.mxu0 0
        %728 = vmatpush1.bf16.xpose.msra.mxu0 0
        %729 = vmatprep.mubr.bf16.mxu0 0
        %730 = vmatmul.mubr.bf16.gmra.mrb[0].mxu0 %v671
        %v731 = vpop.f32.mrb[0].mxu0
        %v732 = vadd.f32 0.0, %v731
        %v733 = vpop.f32.mrb[0].mxu0
        %v734 = vpop.f32.mrb[0].mxu0
        %v735 = vpop.f32.mrb[0].mxu0
        %736 = vdwg.mxu0
        %v737 = vsel %vm551, %v732, -1e+30
        %738 = vmax.xlane.f32.xlu0 %v737
        %v739 = vpop.xlane.xlu0 %738
        %v740 = vsub.f32 %v737, %v739
        %v741 = vmul.f32 %v740, 1.442695
        %v742 = vpow.pop %v741
        %743 = vadd.xlane.f32.xlu0 %v742
        %v744 = vpop.xlane.xlu0 %743
        %v745 = vrcp.pop %v744
        %v746 = vmul.f32 %v742, %v745
        %v747 = vpack.c.bf16 %v746, %v746
        %748 = vrot.lane.b32.xlu0 %v595, 120
        %v749 = vpop.permute.xlu0 %748
        %750 = vrot.lane.b32.xlu0 %v596, 120
        %v751 = vpop.permute.xlu0 %750
        %752 = vrot.lane.b32.xlu0 %v597, 120
        %v753 = vpop.permute.xlu0 %752
        %754 = vrot.lane.b32.xlu0 %v598, 120
        %v755 = vpop.permute.xlu0 %754
        %756 = vrot.lane.b32.xlu0 %v599, 120
        %v757 = vpop.permute.xlu0 %756
        %758 = vrot.lane.b32.xlu0 %v600, 120
        %v759 = vpop.permute.xlu0 %758
        %760 = vrot.lane.b32.xlu0 %v601, 120
        %v761 = vpop.permute.xlu0 %760
        %762 = vrot.lane.b32.xlu0 %v602, 120
        %v763 = vpop.permute.xlu0 %762
        %772 = vmatprep.subr.bf16.mxu0 0
        %773 = vmatpush1.bf16.msra.mxu0 %v749
        %774 = vmatprep.subr.bf16.mxu0 0
        %775 = vmatpush1.bf16.msra.mxu0 %v751
        %776 = vmatprep.subr.bf16.mxu0 0
        %777 = vmatpush1.bf16.msra.mxu0 %v753
        %778 = vmatprep.subr.bf16.mxu0 0
        %779 = vmatpush1.bf16.msra.mxu0 %v755
        %780 = vmatprep.subr.bf16.mxu0 0
        %781 = vmatpush1.bf16.msra.mxu0 %v757
        %782 = vmatprep.subr.bf16.mxu0 0
        %783 = vmatpush1.bf16.msra.mxu0 %v759
        %784 = vmatprep.subr.bf16.mxu0 0
        %785 = vmatpush1.bf16.msra.mxu0 %v761
        %786 = vmatprep.subr.bf16.mxu0 0
        %787 = vmatpush1.bf16.msra.mxu0 %v763
        %788 = vmatprep.subr.bf16.mxu0 0
        %789 = vmatpush1.bf16.msra.mxu0 0
        %790 = vmatprep.subr.bf16.mxu0 0
        %791 = vmatpush1.bf16.msra.mxu0 0
        %792 = vmatprep.subr.bf16.mxu0 0
        %793 = vmatpush1.bf16.msra.mxu0 0
        %794 = vmatprep.subr.bf16.mxu0 0
        %795 = vmatpush1.bf16.msra.mxu0 0
        %796 = vmatprep.subr.bf16.mxu0 0
        %797 = vmatpush1.bf16.msra.mxu0 0
        %798 = vmatprep.subr.bf16.mxu0 0
        %799 = vmatpush1.bf16.msra.mxu0 0
        %800 = vmatprep.subr.bf16.mxu0 0
        %801 = vmatpush1.bf16.msra.mxu0 0
        %802 = vmatprep.subr.bf16.mxu0 0
        %803 = vmatpush1.bf16.msra.mxu0 0
        %804 = vmatprep.mubr.bf16.mxu0 0
        %805 = vmatmul.mubr.bf16.gmra.mrb[0].mxu0 %v747
        %v806 = vpop.f32.mrb[0].mxu0
        %v807 = vadd.f32 0.0, %v806
        %v808 = vpop.f32.mrb[0].mxu0
        %v809 = vpop.f32.mrb[0].mxu0
        %v810 = vpop.f32.mrb[0].mxu0
        %811 = vdwg.mxu0
        %812 = vrot.lane.b32.xlu0 %v408, 112
        %v813 = vpop.permute.xlu0 %812
        %814 = vrot.lane.b32.xlu0 %v473, 112
        %v815 = vpop.permute.xlu0 %814
        %816 = vrot.lane.b32.xlu0 %v474, 112
        %v817 = vpop.permute.xlu0 %816
        %818 = vrot.lane.b32.xlu0 %v475, 112
        %v819 = vpop.permute.xlu0 %818
        %820 = vrot.lane.b32.xlu0 %v476, 112
        %v821 = vpop.permute.xlu0 %820
        %822 = vrot.lane.b32.xlu0 %v477, 112
        %v823 = vpop.permute.xlu0 %822
        %824 = vrot.lane.b32.xlu0 %v478, 112
        %v825 = vpop.permute.xlu0 %824
        %826 = vrot.lane.b32.xlu0 %v479, 112
        %v827 = vpop.permute.xlu0 %826
        %828 = vrot.lane.b32.xlu0 %v480, 112
        %v829 = vpop.permute.xlu0 %828
        %v831 = vsel %vm481, %v813, 0
        %v834 = vsel %vm481, %v815, 0
        %v837 = vsel %vm481, %v817, 0
        %v840 = vsel %vm481, %v819, 0
        %v843 = vsel %vm481, %v821, 0
        %v846 = vsel %vm481, %v823, 0
        %v849 = vsel %vm481, %v825, 0
        %v852 = vsel %vm481, %v827, 0
        %v855 = vsel %vm481, %v829, 0
        %857 = vmatprep.subr.bf16.mxu0 0
        %858 = vmatpush1.bf16.xpose.msra.mxu0 %v834
        %859 = vmatprep.subr.bf16.mxu0 0
        %860 = vmatpush1.bf16.xpose.msra.mxu0 %v837
        %861 = vmatprep.subr.bf16.mxu0 0
        %862 = vmatpush1.bf16.xpose.msra.mxu0 %v840
        %863 = vmatprep.subr.bf16.mxu0 0
        %864 = vmatpush1.bf16.xpose.msra.mxu0 %v843
        %865 = vmatprep.subr.bf16.mxu0 0
        %866 = vmatpush1.bf16.xpose.msra.mxu0 %v846
        %867 = vmatprep.subr.bf16.mxu0 0
        %868 = vmatpush1.bf16.xpose.msra.mxu0 %v849
        %869 = vmatprep.subr.bf16.mxu0 0
        %870 = vmatpush1.bf16.xpose.msra.mxu0 %v852
        %871 = vmatprep.subr.bf16.mxu0 0
        %872 = vmatpush1.bf16.xpose.msra.mxu0 %v855
        %873 = vmatprep.subr.bf16.mxu0 0
        %874 = vmatpush1.bf16.xpose.msra.mxu0 0
        %875 = vmatprep.subr.bf16.mxu0 0
        %876 = vmatpush1.bf16.xpose.msra.mxu0 0
        %877 = vmatprep.subr.bf16.mxu0 0
        %878 = vmatpush1.bf16.xpose.msra.mxu0 0
        %879 = vmatprep.subr.bf16.mxu0 0
        %880 = vmatpush1.bf16.xpose.msra.mxu0 0
        %881 = vmatprep.subr.bf16.mxu0 0
        %882 = vmatpush1.bf16.xpose.msra.mxu0 0
        %883 = vmatprep.subr.bf16.mxu0 0
        %884 = vmatpush1.bf16.xpose.msra.mxu0 0
        %885 = vmatprep.subr.bf16.mxu0 0
        %886 = vmatpush1.bf16.xpose.msra.mxu0 0
        %887 = vmatprep.subr.bf16.mxu0 0
        %888 = vmatpush1.bf16.xpose.msra.mxu0 0
        %889 = vmatprep.mubr.bf16.mxu0 0
        %890 = vmatmul.mubr.bf16.gmra.mrb[0].mxu0 %v831
        %v891 = vpop.f32.mrb[0].mxu0
        %v892 = vadd.f32 0.0, %v891
        %v893 = vpop.f32.mrb[0].mxu0
        %v894 = vpop.f32.mrb[0].mxu0
        %v895 = vpop.f32.mrb[0].mxu0
        %896 = vdwg.mxu0
        %v897 = vsel %vm551, %v892, -1e+30
        %898 = vmax.xlane.f32.xlu0 %v897
        %v899 = vpop.xlane.xlu0 %898
        %v900 = vsub.f32 %v897, %v899
        %v901 = vmul.f32 %v900, 1.442695
        %v902 = vpow.pop %v901
        %903 = vadd.xlane.f32.xlu0 %v902
        %v904 = vpop.xlane.xlu0 %903
        %v905 = vrcp.pop %v904
        %v906 = vmul.f32 %v902, %v905
        %v907 = vpack.c.bf16 %v906, %v906
        %908 = vrot.lane.b32.xlu0 %v595, 112
        %v909 = vpop.permute.xlu0 %908
        %910 = vrot.lane.b32.xlu0 %v596, 112
        %v911 = vpop.permute.xlu0 %910
        %912 = vrot.lane.b32.xlu0 %v597, 112
        %v913 = vpop.permute.xlu0 %912
        %914 = vrot.lane.b32.xlu0 %v598, 112
        %v915 = vpop.permute.xlu0 %914
        %916 = vrot.lane.b32.xlu0 %v599, 112
        %v917 = vpop.permute.xlu0 %916
        %918 = vrot.lane.b32.xlu0 %v600, 112
        %v919 = vpop.permute.xlu0 %918
        %920 = vrot.lane.b32.xlu0 %v601, 112
        %v921 = vpop.permute.xlu0 %920
        %922 = vrot.lane.b32.xlu0 %v602, 112
        %v923 = vpop.permute.xlu0 %922
        %932 = vmatprep.subr.bf16.mxu0 0
        %933 = vmatpush1.bf16.msra.mxu0 %v909
        %934 = vmatprep.subr.bf16.mxu0 0
        %935 = vmatpush1.bf16.msra.mxu0 %v911
        %936 = vmatprep.subr.bf16.mxu0 0
        %937 = vmatpush1.bf16.msra.mxu0 %v913
        %938 = vmatprep.subr.bf16.mxu0 0
        %939 = vmatpush1.bf16.msra.mxu0 %v915
        %940 = vmatprep.subr.bf16.mxu0 0
        %941 = vmatpush1.bf16.msra.mxu0 %v917
        %942 = vmatprep.subr.bf16.mxu0 0
        %943 = vmatpush1.bf16.msra.mxu0 %v919
        %944 = vmatprep.subr.bf16.mxu0 0
        %945 = vmatpush1.bf16.msra.mxu0 %v921
        %946 = vmatprep.subr.bf16.mxu0 0
        %947 = vmatpush1.bf16.msra.mxu0 %v923
        %948 = vmatprep.subr.bf16.mxu0 0
        %949 = vmatpush1.bf16.msra.mxu0 0
        %950 = vmatprep.subr.bf16.mxu0 0
        %951 = vmatpush1.bf16.msra.mxu0 0
        %952 = vmatprep.subr.bf16.mxu0 0
        %953 = vmatpush1.bf16.msra.mxu0 0
        %954 = vmatprep.subr.bf16.mxu0 0
        %955 = vmatpush1.bf16.msra.mxu0 0
        %956 = vmatprep.subr.bf16.mxu0 0
        %957 = vmatpush1.bf16.msra.mxu0 0
        %958 = vmatprep.subr.bf16.mxu0 0
        %959 = vmatpush1.bf16.msra.mxu0 0
        %960 = vmatprep.subr.bf16.mxu0 0
        %961 = vmatpush1.bf16.msra.mxu0 0
        %962 = vmatprep.subr.bf16.mxu0 0
        %963 = vmatpush1.bf16.msra.mxu0 0
        %964 = vmatprep.mubr.bf16.mxu0 0
        %965 = vmatmul.mubr.bf16.gmra.mrb[0].mxu0 %v907
        %v966 = vpop.f32.mrb[0].mxu0
        %v967 = vadd.f32 0.0, %v966
        %v968 = vpop.f32.mrb[0].mxu0
        %v969 = vpop.f32.mrb[0].mxu0
        %v970 = vpop.f32.mrb[0].mxu0
        %971 = vdwg.mxu0
        %972 = vrot.lane.b32.xlu0 %v408, 104
        %v973 = vpop.permute.xlu0 %972
        %974 = vrot.lane.b32.xlu0 %v473, 104
        %v975 = vpop.permute.xlu0 %974
        %976 = vrot.lane.b32.xlu0 %v474, 104
        %v977 = vpop.permute.xlu0 %976
        %978 = vrot.lane.b32.xlu0 %v475, 104
        %v979 = vpop.permute.xlu0 %978
        %980 = vrot.lane.b32.xlu0 %v476, 104
        %v981 = vpop.permute.xlu0 %980
        %982 = vrot.lane.b32.xlu0 %v477, 104
        %v983 = vpop.permute.xlu0 %982
        %984 = vrot.lane.b32.xlu0 %v478, 104
        %v985 = vpop.permute.xlu0 %984
        %986 = vrot.lane.b32.xlu0 %v479, 104
        %v987 = vpop.permute.xlu0 %986
        %988 = vrot.lane.b32.xlu0 %v480, 104
        %v989 = vpop.permute.xlu0 %988
        %v991 = vsel %vm481, %v973, 0
        %v994 = vsel %vm481, %v975, 0
        %v997 = vsel %vm481, %v977, 0
        %v1000 = vsel %vm481, %v979, 0
        %v1003 = vsel %vm481, %v981, 0
        %v1006 = vsel %vm481, %v983, 0
        %v1009 = vsel %vm481, %v985, 0
        %v1012 = vsel %vm481, %v987, 0
        %v1015 = vsel %vm481, %v989, 0
        %1017 = vmatprep.subr.bf16.mxu0 0
        %1018 = vmatpush1.bf16.xpose.msra.mxu0 %v994
        %1019 = vmatprep.subr.bf16.mxu0 0
        %1020 = vmatpush1.bf16.xpose.msra.mxu0 %v997
        %1021 = vmatprep.subr.bf16.mxu0 0
        %1022 = vmatpush1.bf16.xpose.msra.mxu0 %v1000
        %1023 = vmatprep.subr.bf16.mxu0 0
        %1024 = vmatpush1.bf16.xpose.msra.mxu0 %v1003
        %1025 = vmatprep.subr.bf16.mxu0 0
        %1026 = vmatpush1.bf16.xpose.msra.mxu0 %v1006
        %1027 = vmatprep.subr.bf16.mxu0 0
        %1028 = vmatpush1.bf16.xpose.msra.mxu0 %v1009
        %1029 = vmatprep.subr.bf16.mxu0 0
        %1030 = vmatpush1.bf16.xpose.msra.mxu0 %v1012
        %1031 = vmatprep.subr.bf16.mxu0 0
        %1032 = vmatpush1.bf16.xpose.msra.mxu0 %v1015
        %1033 = vmatprep.subr.bf16.mxu0 0
        %1034 = vmatpush1.bf16.xpose.msra.mxu0 0
        %1035 = vmatprep.subr.bf16.mxu0 0
        %1036 = vmatpush1.bf16.xpose.msra.mxu0 0
        %1037 = vmatprep.subr.bf16.mxu0 0
        %1038 = vmatpush1.bf16.xpose.msra.mxu0 0
        %1039 = vmatprep.subr.bf16.mxu0 0
        %1040 = vmatpush1.bf16.xpose.msra.mxu0 0
        %1041 = vmatprep.subr.bf16.mxu0 0
        %1042 = vmatpush1.bf16.xpose.msra.mxu0 0
        %1043 = vmatprep.subr.bf16.mxu0 0
        %1044 = vmatpush1.bf16.xpose.msra.mxu0 0
        %1045 = vmatprep.subr.bf16.mxu0 0
        %1046 = vmatpush1.bf16.xpose.msra.mxu0 0
        %1047 = vmatprep.subr.bf16.mxu0 0
        %1048 = vmatpush1.bf16.xpose.msra.mxu0 0
        %1049 = vmatprep.mubr.bf16.mxu0 0
        %1050 = vmatmul.mubr.bf16.gmra.mrb[0].mxu0 %v991
        %v1051 = vpop.f32.mrb[0].mxu0
        %v1052 = vadd.f32 0.0, %v1051
        %v1053 = vpop.f32.mrb[0].mxu0
        %v1054 = vpop.f32.mrb[0].mxu0
        %v1055 = vpop.f32.mrb[0].mxu0
        %1056 = vdwg.mxu0
        %v1057 = vsel %vm551, %v1052, -1e+30
        %1058 = vmax.xlane.f32.xlu0 %v1057
        %v1059 = vpop.xlane.xlu0 %1058
        %v1060 = vsub.f32 %v1057, %v1059
        %v1061 = vmul.f32 %v1060, 1.442695
        %v1062 = vpow.pop %v1061
        %1063 = vadd.xlane.f32.xlu0 %v1062
        %v1064 = vpop.xlane.xlu0 %1063
        %v1065 = vrcp.pop %v1064
        %v1066 = vmul.f32 %v1062, %v1065
        %v1067 = vpack.c.bf16 %v1066, %v1066
        %1068 = vrot.lane.b32.xlu0 %v595, 104
        %v1069 = vpop.permute.xlu0 %1068
        %1070 = vrot.lane.b32.xlu0 %v596, 104
        %v1071 = vpop.permute.xlu0 %1070
        %1072 = vrot.lane.b32.xlu0 %v597, 104
        %v1073 = vpop.permute.xlu0 %1072
        %1074 = vrot.lane.b32.xlu0 %v598, 104
        %v1075 = vpop.permute.xlu0 %1074
        %1076 = vrot.lane.b32.xlu0 %v599, 104
        %v1077 = vpop.permute.xlu0 %1076
        %1078 = vrot.lane.b32.xlu0 %v600, 104
        %v1079 = vpop.permute.xlu0 %1078
        %1080 = vrot.lane.b32.xlu0 %v601, 104
        %v1081 = vpop.permute.xlu0 %1080
        %1082 = vrot.lane.b32.xlu0 %v602, 104
        %v1083 = vpop.permute.xlu0 %1082
        %1092 = vmatprep.subr.bf16.mxu0 0
        %1093 = vmatpush1.bf16.msra.mxu0 %v1069
        %1094 = vmatprep.subr.bf16.mxu0 0
        %1095 = vmatpush1.bf16.msra.mxu0 %v1071
        %1096 = vmatprep.subr.bf16.mxu0 0
        %1097 = vmatpush1.bf16.msra.mxu0 %v1073
        %1098 = vmatprep.subr.bf16.mxu0 0
        %1099 = vmatpush1.bf16.msra.mxu0 %v1075
        %1100 = vmatprep.subr.bf16.mxu0 0
        %1101 = vmatpush1.bf16.msra.mxu0 %v1077
        %1102 = vmatprep.subr.bf16.mxu0 0
        %1103 = vmatpush1.bf16.msra.mxu0 %v1079
        %1104 = vmatprep.subr.bf16.mxu0 0
        %1105 = vmatpush1.bf16.msra.mxu0 %v1081
        %1106 = vmatprep.subr.bf16.mxu0 0
        %1107 = vmatpush1.bf16.msra.mxu0 %v1083
        %1108 = vmatprep.subr.bf16.mxu0 0
        %1109 = vmatpush1.bf16.msra.mxu0 0
        %1110 = vmatprep.subr.bf16.mxu0 0
        %1111 = vmatpush1.bf16.msra.mxu0 0
        %1112 = vmatprep.subr.bf16.mxu0 0
        %1113 = vmatpush1.bf16.msra.mxu0 0
        %1114 = vmatprep.subr.bf16.mxu0 0
        %1115 = vmatpush1.bf16.msra.mxu0 0
        %1116 = vmatprep.subr.bf16.mxu0 0
        %1117 = vmatpush1.bf16.msra.mxu0 0
        %1118 = vmatprep.subr.bf16.mxu0 0
        %1119 = vmatpush1.bf16.msra.mxu0 0
        %1120 = vmatprep.subr.bf16.mxu0 0
        %1121 = vmatpush1.bf16.msra.mxu0 0
        %1122 = vmatprep.subr.bf16.mxu0 0
        %1123 = vmatpush1.bf16.msra.mxu0 0
        %1124 = vmatprep.mubr.bf16.mxu0 0
        %1125 = vmatmul.mubr.bf16.gmra.mrb[0].mxu0 %v1067
        %v1126 = vpop.f32.mrb[0].mxu0
        %v1127 = vadd.f32 0.0, %v1126
        %v1128 = vpop.f32.mrb[0].mxu0
        %v1129 = vpop.f32.mrb[0].mxu0
        %v1130 = vpop.f32.mrb[0].mxu0
        %1131 = vdwg.mxu0
        %1133 = vrot.lane.b32.xlu0 %v807, 8
        %v1134 = vpop.permute.xlu0 %1133
        %1137 = vrot.lane.b32.xlu0 %v967, 16
        %v1138 = vpop.permute.xlu0 %1137
        %1141 = vrot.lane.b32.xlu0 %v1127, 24
        %v1142 = vpop.permute.xlu0 %1141
        %v1144 = vsel %vm481, %v646, %v1134
        %vm1145 = vcmask 130048
        %v1146 = vsel %vm1145, %v1144, %v1138
        %vm1147 = vcmask 195584
        %v1148 = vsel %vm1147, %v1146, %v1142
        %v1149 = vpack.c.bf16 %v1148, %v1148
        %v1150 = vld [vmem:[%s5] sm:$0xf]
        %v1151 = vld [vmem:[%s5 + $0x4] sm:$0xf]
        %v1152 = vld [vmem:[%s5 + $0x8] sm:$0xf]
        %v1153 = vld [vmem:[%s5 + $0xc] sm:$0xf]
        %v1154 = vld [vmem:[%s6] sm:$0x1]
        %v1155 = vunpack.c.l.bf16 %v1154
        %v1156 = vlaneseq
        %v1157 = vshrl.u32 %v1156, 7
        %v1158 = vsub.s32 0, %v1157
        %v1159 = vrot.slane %v1155, %v1158
        %v1164 = vunpack.c.l.b16 %v1150
        %v1165 = vunpack.c.l.b16 %v1151
        %v1166 = vunpack.c.l.b16 %v1152
        %v1167 = vunpack.c.l.b16 %v1153
        %v1168 = vpack.c.b16 %v1165, %v1164
        %v1169 = vpack.c.b16 %v1167, %v1166
        %v1173 = vsel %vm363, %v1149, 0
        %1175 = vmatprep.subr.bf16.mxu0 0
        %1176 = vmatpush1.bf16.msra.mxu0 %v1168
        %1177 = vmatprep.subr.bf16.mxu0 0
        %1178 = vmatpush1.bf16.msra.mxu0 %v1169
        %1179 = vmatprep.subr.bf16.mxu0 0
        %1180 = vmatpush1.bf16.msra.mxu0 0
        %1181 = vmatprep.subr.bf16.mxu0 0
        %1182 = vmatpush1.bf16.msra.mxu0 0
        %1183 = vmatprep.subr.bf16.mxu0 0
        %1184 = vmatpush1.bf16.msra.mxu0 0
        %1185 = vmatprep.subr.bf16.mxu0 0
        %1186 = vmatpush1.bf16.msra.mxu0 0
        %1187 = vmatprep.subr.bf16.mxu0 0
        %1188 = vmatpush1.bf16.msra.mxu0 0
        %1189 = vmatprep.subr.bf16.mxu0 0
        %1190 = vmatpush1.bf16.msra.mxu0 0
        %1191 = vmatprep.subr.bf16.mxu0 0
        %1192 = vmatpush1.bf16.msra.mxu0 0
        %1193 = vmatprep.subr.bf16.mxu0 0
        %1194 = vmatpush1.bf16.msra.mxu0 0
        %1195 = vmatprep.subr.bf16.mxu0 0
        %1196 = vmatpush1.bf16.msra.mxu0 0
        %1197 = vmatprep.subr.bf16.mxu0 0
        %1198 = vmatpush1.bf16.msra.mxu0 0
        %1199 = vmatprep.subr.bf16.mxu0 0
        %1200 = vmatpush1.bf16.msra.mxu0 0
        %1201 = vmatprep.subr.bf16.mxu0 0
        %1202 = vmatpush1.bf16.msra.mxu0 0
        %1203 = vmatprep.subr.bf16.mxu0 0
        %1204 = vmatpush1.bf16.msra.mxu0 0
        %1205 = vmatprep.subr.bf16.mxu0 0
        %1206 = vmatpush1.bf16.msra.mxu0 0
        %1207 = vmatprep.mubr.bf16.mxu0 0
        %1208 = vmatmul.mubr.bf16.gmra.mrb[0].mxu0 %v1173
        %v1209 = vpop.f32.mrb[0].mxu0
        %v1210 = vadd.f32 %v1159, %v1209
        %v1211 = vpop.f32.mrb[0].mxu0
        %v1212 = vpop.f32.mrb[0].mxu0
        %v1213 = vpop.f32.mrb[0].mxu0
        %1214 = vdwg.mxu0
        %v1215 = vpack.c.bf16 %v1210, %v1210
        %vm1216 = vcmask 257024
        %1217 = vst.msk [vmem:[%s321] sm:$0xf] %vm1216, %v1215
        %s1218 = sand.u32 %s207, 1
        %s1219 = scalar_lea.sflag [#allocation3], %s1218
        %s1220 = sand.u32 %s207, 1
        %s1221 = smul.addr %s1220, 4
        %s1222 = scalar_lea.vmem [#allocation2], %s1221
        // Predicated region
        $region49: #{tpu_custom_call.1} parent=47 // pred_check
          %p1223 = pneg %p217
        $region50: #{tpu_custom_call.1} parent=47 // pred_check_branch
          %1225 = sbr.rel (%p1223) target = $region52
        $region51: #{tpu_custom_call.1} parent=47 // pred_region
          %s1227 = ssub.s32 64, 64
          %1228 = vsyncadd %s1219, %s1227
          %s1229 = sadd.s32 %s26, %s25
          %s1230 = smul.addr %s1229, 64
          %s1231 = scalar_lea.hbm %s7, %s1230
          %s1233 = sshll.u32 %s1222, 4
          %s1234 = int_to_ptr.vmem [resolvable:$true] %s1233
          %1236 = dma.vmem_to_hbm [thread:$0]  %s1234, 64, %s1231, %s1219
        $region52: #{tpu_custom_call.1} parent=47 // pred_fallthru
          _
      $region48: #{tpu_custom_call.1} parent=5 // pred_fallthru
        _
      %p1237 = scmp.le.s32.totalorder 2, %s16
      // Predicated region
      $region53: #{tpu_custom_call.1} parent=5 // pred_check
        %p1238 = pneg %p1237
      $region54: #{tpu_custom_call.1} parent=5 // pred_check_branch
        %1240 = sbr.rel (%p1238) target = $region56
      $region55: #{tpu_custom_call.1} parent=5 // pred_region
        %s1241 = ssub.s32 %s16, 2
        // Predicated region
        $region57: #{tpu_custom_call.1} parent=55 // pred_check
          %p1242 = pneg %p223
        $region58: #{tpu_custom_call.1} parent=55 // pred_check_branch
          %1244 = sbr.rel (%p1242) target = $region60
        $region59: #{tpu_custom_call.1} parent=55 // pred_region
          %s1245 = sand.u32 %s208, 1
          %s1246 = scalar_lea.sflag [#allocation3], %s1245
          %s1247 = sand.u32 %s208, 1
          %s1248 = smul.addr %s1247, 4
          %s1249 = scalar_lea.vmem [#allocation2], %s1248
          %1250 = dma.done %s1246, 64
        $region60: #{tpu_custom_call.1} parent=55 // pred_fallthru
          _
      $region56: #{tpu_custom_call.1} parent=5 // pred_fallthru
        _
    $region6: #{tpu_custom_call.1} parent=1 // loop_footer
      %s20 = sadd.s32 1, %s16
    $region7: #{tpu_custom_call.1} parent=1 // loop_footer_branch
      %15 = sbr.rel target = $region3
    $region8: #{tpu_custom_call.1} parent=1 // loop_exit
      _
    %1251 = vsyncpa [#allocation3], 1
    %s1252 = scalar_lea.sflag [#allocation3], 1
    %1253 = vsyncpa %s1252, 1

</llo_original>
